<compile_context>
chip_gen: v7x
topology: tpu7x:2x2x1
jax: 0.10.0
libtpu: 0.0.40
codegen_flags: <defaults>
</compile_context>

<pallas_src>
import jax
import jax.numpy as jnp
from jax.experimental import pallas as pl
from jax.experimental.pallas import tpu as pltpu

IMG_DIM = 512
TXT_DIM = 512
RS_HID = 64
OUT_HID = 128
POSE_DIM = 2
OUT_PAD = 128  # W4 is zero-padded to 128 output lanes for a clean MXU tile


def _pose_kernel(img_ref, txt_ref, rs_ref,
                 w1_ref, b1_ref, w2_ref, b2_ref,
                 w3i_ref, w3t_ref, w3r_ref, b3_ref,
                 w4_ref, b4_ref,
                 out_ref):
    cdt = w1_ref.dtype  # bf16 compute dtype (weights are pre-packed)

    # robot_state_fc: Linear -> ReLU -> Linear (bf16 matmuls, f32 accumulation)
    h1 = jnp.dot(rs_ref[...].astype(cdt), w1_ref[...],
                 preferred_element_type=jnp.float32) + b1_ref[...]
    h1 = jnp.maximum(h1, 0.0)
    rs_feat = jnp.dot(h1.astype(cdt), w2_ref[...],
                      preferred_element_type=jnp.float32) + b2_ref[...]

    # output_layer Linear(1088, 128) as three split-K dots into one f32 acc:
    # concat(img, txt, rs_feat) @ W3 == img@W3_img + txt@W3_txt + rs_feat@W3_rs
    z = (jnp.dot(img_ref[...].astype(cdt), w3i_ref[...],
                 preferred_element_type=jnp.float32)
         + jnp.dot(txt_ref[...].astype(cdt), w3t_ref[...],
                   preferred_element_type=jnp.float32)
         + jnp.dot(rs_feat.astype(cdt), w3r_ref[...],
                   preferred_element_type=jnp.float32)
         + b3_ref[...])
    z = jnp.maximum(z, 0.0)

    # output_layer Linear(128, 2); W4 is zero-padded to 128 output columns so
    # the MXU tile is full-width.  Only the first POSE_DIM lanes are real.
    pred = jnp.dot(z.astype(cdt), w4_ref[...],
                   preferred_element_type=jnp.float32) + b4_ref[...]
    p2 = pred[:, :POSE_DIM]

    # L2 normalise along the feature dim (eps guards an exactly-zero row).
    inv = jax.lax.rsqrt(jnp.sum(p2 * p2, axis=1, keepdims=True) + 1e-12)
    out_ref[...] = p2 * inv


def _round_up(x, m):
    return (x + m - 1) // m * m


def _choose_tiling(B, tile_b_max=512):
    # Enough steps to keep tiles <= tile_b_max; at least 2 steps when B >= 32
    # so both v7x TensorCores get work and the activation DMA pipelines.
    steps = pl.cdiv(B, tile_b_max)
    if B >= 32:
        steps = max(steps, 2)
    tile_b = _round_up(pl.cdiv(B, steps), 16)   # bf16 sublane packing
    b_pad = _round_up(B, tile_b)
    return tile_b, b_pad


def pack_params(params, compute_dtype=jnp.bfloat16):
    """One-time weight packing: bf16 weights (MXU native), f32 biases,
    W4/b4 zero-padded to 128 output lanes.  Do NOT call per forward."""
    w4p = jnp.zeros((OUT_HID, OUT_PAD), compute_dtype)
    w4p = w4p.at[:, :POSE_DIM].set(params["w4"].astype(compute_dtype))
    b4p = jnp.zeros((1, OUT_PAD), jnp.float32)
    b4p = b4p.at[:, :POSE_DIM].set(params["b4"].astype(jnp.float32))
    return {
        "w1": params["w1"].astype(compute_dtype),
        "b1": params["b1"].astype(jnp.float32),
        "w2": params["w2"].astype(compute_dtype),
        "b2": params["b2"].astype(jnp.float32),
        "w3_img": params["w3_img"].astype(compute_dtype),
        "w3_txt": params["w3_txt"].astype(compute_dtype),
        "w3_rs": params["w3_rs"].astype(compute_dtype),
        "b3": params["b3"].astype(jnp.float32),
        "w4p": w4p,
        "b4p": b4p,
    }


def robot_pose_prediction(img_features, text_features, robot_state, packed,
                          *, tile_b_max=512):
    B = img_features.shape[0]
    rs_dim = robot_state.shape[1]
    tile_b, b_pad = _choose_tiling(B, tile_b_max)

    img = img_features
    txt = text_features
    rs = robot_state
    if b_pad != B:
        img = jnp.pad(img, ((0, b_pad - B), (0, 0)))
        txt = jnp.pad(txt, ((0, b_pad - B), (0, 0)))
        rs = jnp.pad(rs, ((0, b_pad - B), (0, 0)))

    def batch_spec(feat):
        return pl.BlockSpec((tile_b, feat), lambda i: (i, 0))

    def param_spec(shape):
        # Constant block index -> the parameter re-DMA is skipped on every grid
        # step after the first.
        return pl.BlockSpec(shape, lambda i: (0, 0))

    grid = (b_pad // tile_b,)

    out = pl.pallas_call(
        _pose_kernel,
        out_shape=jax.ShapeDtypeStruct((b_pad, POSE_DIM), jnp.float32),
        grid_spec=pltpu.PrefetchScalarGridSpec(
            num_scalar_prefetch=0,
            grid=grid,
            in_specs=[
                batch_spec(IMG_DIM),
                batch_spec(TXT_DIM),
                batch_spec(rs_dim),
                param_spec(packed["w1"].shape), param_spec(packed["b1"].shape),
                param_spec(packed["w2"].shape), param_spec(packed["b2"].shape),
                param_spec(packed["w3_img"].shape),
                param_spec(packed["w3_txt"].shape),
                param_spec(packed["w3_rs"].shape),
                param_spec(packed["b3"].shape),
                param_spec(packed["w4p"].shape), param_spec(packed["b4p"].shape),
            ],
            out_specs=pl.BlockSpec((tile_b, POSE_DIM), lambda i: (i, 0)),
        ),
        compiler_params=pltpu.CompilerParams(
            dimension_semantics=("parallel",)),
    )(img, txt, rs,
      packed["w1"], packed["b1"], packed["w2"], packed["b2"],
      packed["w3_img"], packed["w3_txt"], packed["w3_rs"], packed["b3"],
      packed["w4p"], packed["b4p"])

    return out if b_pad == B else out[:B]


def init_params(key, robot_state_dim):
    ks = jax.random.split(key, 10)
    scale = 0.02
    return {
        # robot_state_fc
        "w1": scale * jax.random.normal(ks[0], (robot_state_dim, RS_HID), jnp.float32),
        "b1": scale * jax.random.normal(ks[1], (1, RS_HID), jnp.float32),
        "w2": scale * jax.random.normal(ks[2], (RS_HID, RS_HID), jnp.float32),
        "b2": scale * jax.random.normal(ks[3], (1, RS_HID), jnp.float32),
        # output_layer Linear(1088, 128), stored split along the input dim
        "w3_img": scale * jax.random.normal(ks[4], (IMG_DIM, OUT_HID), jnp.float32),
        "w3_txt": scale * jax.random.normal(ks[5], (TXT_DIM, OUT_HID), jnp.float32),
        "w3_rs": scale * jax.random.normal(ks[6], (RS_HID, OUT_HID), jnp.float32),
        "b3": scale * jax.random.normal(ks[7], (1, OUT_HID), jnp.float32),
        # output_layer Linear(128, 2)
        "w4": scale * jax.random.normal(ks[8], (OUT_HID, POSE_DIM), jnp.float32),
        "b4": scale * jax.random.normal(ks[9], (1, POSE_DIM), jnp.float32),
    }


def reference(img_features, text_features, robot_state, p):
    h1 = jnp.maximum(robot_state @ p["w1"] + p["b1"], 0.0)
    rs_feat = h1 @ p["w2"] + p["b2"]
    combined = jnp.concatenate([img_features, text_features, rs_feat], axis=1)
    w3 = jnp.concatenate([p["w3_img"], p["w3_txt"], p["w3_rs"]], axis=0)
    z = jnp.maximum(combined @ w3 + p["b3"], 0.0)
    pred = z @ p["w4"] + p["b4"]
    return pred / jnp.linalg.norm(pred, axis=1, keepdims=True)


if __name__ == "__main__":
    B = 32
    ROBOT_STATE_DIM = 16

    key = jax.random.PRNGKey(0)
    k_img, k_txt, k_rs, k_par = jax.random.split(key, 4)

    # Stand-ins for clip_model.encode_image / encode_text outputs (B, 512).
    img_features = jax.random.normal(k_img, (B, IMG_DIM), jnp.float32)
    text_features = jax.random.normal(k_txt, (B, TXT_DIM), jnp.float32)
    robot_state = jax.random.normal(k_rs, (B, ROBOT_STATE_DIM), jnp.float32)

    params = init_params(k_par, ROBOT_STATE_DIM)
    packed = jax.tree_util.tree_map(jax.block_until_ready, pack_params(params))

    out = robot_pose_prediction(img_features, text_features, robot_state, packed)
    out = jax.block_until_ready(out)

    ref = reference(img_features, text_features, robot_state, params)
    assert out.shape == (B, POSE_DIM)
    # bf16 matmul inputs (f32 accumulation) vs. f32 reference -> loose tolerance
    assert jnp.allclose(out, ref, atol=5e-2, rtol=5e-2), "mismatch vs reference"
    # rows must be unit-norm (computed in f32 inside the kernel)
    assert jnp.allclose(jnp.linalg.norm(out, axis=1), 1.0, atol=1e-3)

    print("KERNEL_OK")
</pallas_src>

<mosaic_0001>
module attributes {stable_mosaic.version = 11 : i64} {
  func.func @_pose_kernel(%arg0: i32, %arg1: memref<16x512xf32, #tpu.memory_space<vmem>>, %arg2: memref<16x512xf32, #tpu.memory_space<vmem>>, %arg3: memref<16x16xf32, #tpu.memory_space<vmem>>, %arg4: memref<16x64xbf16, #tpu.memory_space<vmem>>, %arg5: memref<1x64xf32, #tpu.memory_space<vmem>>, %arg6: memref<64x64xbf16, #tpu.memory_space<vmem>>, %arg7: memref<1x64xf32, #tpu.memory_space<vmem>>, %arg8: memref<512x128xbf16, #tpu.memory_space<vmem>>, %arg9: memref<512x128xbf16, #tpu.memory_space<vmem>>, %arg10: memref<64x128xbf16, #tpu.memory_space<vmem>>, %arg11: memref<1x128xf32, #tpu.memory_space<vmem>>, %arg12: memref<128x128xbf16, #tpu.memory_space<vmem>>, %arg13: memref<1x128xf32, #tpu.memory_space<vmem>>, %arg14: memref<16x2xf32, #tpu.memory_space<vmem>>) attributes {dimension_semantics = [#tpu.dimension_semantics<parallel>], iteration_bounds = array<i64: 2>, scalar_prefetch = 0 : i64, scratch_operands = 0 : i64, tpu.core_type = #tpu.core_type<tc>, window_params = [{transform_indices = @transform_0, window_bounds = array<i64: 16, 512>}, {transform_indices = @transform_1, window_bounds = array<i64: 16, 512>}, {transform_indices = @transform_2, window_bounds = array<i64: 16, 16>}, {pipeline_mode = #tpu.pipeline_mode<synchronous>, transform_indices = @transform_3, window_bounds = array<i64: 16, 64>}, {pipeline_mode = #tpu.pipeline_mode<synchronous>, transform_indices = @transform_4, window_bounds = array<i64: 1, 64>}, {pipeline_mode = #tpu.pipeline_mode<synchronous>, transform_indices = @transform_5, window_bounds = array<i64: 64, 64>}, {pipeline_mode = #tpu.pipeline_mode<synchronous>, transform_indices = @transform_6, window_bounds = array<i64: 1, 64>}, {pipeline_mode = #tpu.pipeline_mode<synchronous>, transform_indices = @transform_7, window_bounds = array<i64: 512, 128>}, {pipeline_mode = #tpu.pipeline_mode<synchronous>, transform_indices = @transform_8, window_bounds = array<i64: 512, 128>}, {pipeline_mode = #tpu.pipeline_mode<synchronous>, transform_indices = @transform_9, window_bounds = array<i64: 64, 128>}, {pipeline_mode = #tpu.pipeline_mode<synchronous>, transform_indices = @transform_10, window_bounds = array<i64: 1, 128>}, {pipeline_mode = #tpu.pipeline_mode<synchronous>, transform_indices = @transform_11, window_bounds = array<i64: 128, 128>}, {pipeline_mode = #tpu.pipeline_mode<synchronous>, transform_indices = @transform_12, window_bounds = array<i64: 1, 128>}, {transform_indices = @transform_13, window_bounds = array<i64: 16, 2>}]} {
    %c0 = arith.constant 0 : index
    %c0_0 = arith.constant 0 : index
    %0 = vector.load %arg3[%c0, %c0_0] : memref<16x16xf32, #tpu.memory_space<vmem>>, vector<16x16xf32>
    %1 = arith.truncf %0 : vector<16x16xf32> to vector<16x16xbf16>
    %c0_1 = arith.constant 0 : index
    %c0_2 = arith.constant 0 : index
    %2 = vector.load %arg4[%c0_1, %c0_2] : memref<16x64xbf16, #tpu.memory_space<vmem>>, vector<16x64xbf16>
    %cst = arith.constant dense<0.000000e+00> : vector<16x64xf32>
    %3 = tpu.matmul %1, %2, %cst {dimension_numbers = #tpu.dot_dimension_numbers<[1], [0], [0], [1], [0, 0, 1, 1], [], []>} : vector<16x16xbf16>, vector<16x64xbf16>, vector<16x64xf32> -> vector<16x64xf32>
    %c0_3 = arith.constant 0 : index
    %c0_4 = arith.constant 0 : index
    %4 = vector.load %arg5[%c0_3, %c0_4] : memref<1x64xf32, #tpu.memory_space<vmem>>, vector<1x64xf32>
    %5 = vector.broadcast %4 : vector<1x64xf32> to vector<16x64xf32>
    %6 = arith.addf %3, %5 : vector<16x64xf32>
    %cst_5 = arith.constant 0.000000e+00 : f32
    %7 = vector.broadcast %cst_5 : f32 to vector<16x64xf32>
    %8 = arith.maximumf %6, %7 : vector<16x64xf32>
    %9 = arith.truncf %8 : vector<16x64xf32> to vector<16x64xbf16>
    %c0_6 = arith.constant 0 : index
    %c0_7 = arith.constant 0 : index
    %10 = vector.load %arg6[%c0_6, %c0_7] : memref<64x64xbf16, #tpu.memory_space<vmem>>, vector<64x64xbf16>
    %cst_8 = arith.constant dense<0.000000e+00> : vector<16x64xf32>
    %11 = tpu.matmul %9, %10, %cst_8 {dimension_numbers = #tpu.dot_dimension_numbers<[1], [0], [0], [1], [0, 0, 1, 1], [], []>} : vector<16x64xbf16>, vector<64x64xbf16>, vector<16x64xf32> -> vector<16x64xf32>
    %c0_9 = arith.constant 0 : index
    %c0_10 = arith.constant 0 : index
    %12 = vector.load %arg7[%c0_9, %c0_10] : memref<1x64xf32, #tpu.memory_space<vmem>>, vector<1x64xf32>
    %13 = vector.broadcast %12 : vector<1x64xf32> to vector<16x64xf32>
    %14 = arith.addf %11, %13 : vector<16x64xf32>
    %c0_11 = arith.constant 0 : index
    %c0_12 = arith.constant 0 : index
    %15 = vector.load %arg1[%c0_11, %c0_12] : memref<16x512xf32, #tpu.memory_space<vmem>>, vector<16x512xf32>
    %16 = arith.truncf %15 : vector<16x512xf32> to vector<16x512xbf16>
    %c0_13 = arith.constant 0 : index
    %c0_14 = arith.constant 0 : index
    %17 = vector.load %arg8[%c0_13, %c0_14] : memref<512x128xbf16, #tpu.memory_space<vmem>>, vector<512x128xbf16>
    %cst_15 = arith.constant dense<0.000000e+00> : vector<16x128xf32>
    %18 = tpu.matmul %16, %17, %cst_15 {dimension_numbers = #tpu.dot_dimension_numbers<[1], [0], [0], [1], [0, 0, 1, 1], [], []>} : vector<16x512xbf16>, vector<512x128xbf16>, vector<16x128xf32> -> vector<16x128xf32>
    %c0_16 = arith.constant 0 : index
    %c0_17 = arith.constant 0 : index
    %19 = vector.load %arg2[%c0_16, %c0_17] : memref<16x512xf32, #tpu.memory_space<vmem>>, vector<16x512xf32>
    %20 = arith.truncf %19 : vector<16x512xf32> to vector<16x512xbf16>
    %c0_18 = arith.constant 0 : index
    %c0_19 = arith.constant 0 : index
    %21 = vector.load %arg9[%c0_18, %c0_19] : memref<512x128xbf16, #tpu.memory_space<vmem>>, vector<512x128xbf16>
    %cst_20 = arith.constant dense<0.000000e+00> : vector<16x128xf32>
    %22 = tpu.matmul %20, %21, %cst_20 {dimension_numbers = #tpu.dot_dimension_numbers<[1], [0], [0], [1], [0, 0, 1, 1], [], []>} : vector<16x512xbf16>, vector<512x128xbf16>, vector<16x128xf32> -> vector<16x128xf32>
    %23 = arith.addf %18, %22 : vector<16x128xf32>
    %24 = arith.truncf %14 : vector<16x64xf32> to vector<16x64xbf16>
    %c0_21 = arith.constant 0 : index
    %c0_22 = arith.constant 0 : index
    %25 = vector.load %arg10[%c0_21, %c0_22] : memref<64x128xbf16, #tpu.memory_space<vmem>>, vector<64x128xbf16>
    %cst_23 = arith.constant dense<0.000000e+00> : vector<16x128xf32>
    %26 = tpu.matmul %24, %25, %cst_23 {dimension_numbers = #tpu.dot_dimension_numbers<[1], [0], [0], [1], [0, 0, 1, 1], [], []>} : vector<16x64xbf16>, vector<64x128xbf16>, vector<16x128xf32> -> vector<16x128xf32>
    %27 = arith.addf %23, %26 : vector<16x128xf32>
    %c0_24 = arith.constant 0 : index
    %c0_25 = arith.constant 0 : index
    %28 = vector.load %arg11[%c0_24, %c0_25] : memref<1x128xf32, #tpu.memory_space<vmem>>, vector<1x128xf32>
    %29 = vector.broadcast %28 : vector<1x128xf32> to vector<16x128xf32>
    %30 = arith.addf %27, %29 : vector<16x128xf32>
    %cst_26 = arith.constant 0.000000e+00 : f32
    %31 = vector.broadcast %cst_26 : f32 to vector<16x128xf32>
    %32 = arith.maximumf %30, %31 : vector<16x128xf32>
    %33 = arith.truncf %32 : vector<16x128xf32> to vector<16x128xbf16>
    %c0_27 = arith.constant 0 : index
    %c0_28 = arith.constant 0 : index
    %34 = vector.load %arg12[%c0_27, %c0_28] : memref<128x128xbf16, #tpu.memory_space<vmem>>, vector<128x128xbf16>
    %cst_29 = arith.constant dense<0.000000e+00> : vector<16x128xf32>
    %35 = tpu.matmul %33, %34, %cst_29 {dimension_numbers = #tpu.dot_dimension_numbers<[1], [0], [0], [1], [0, 0, 1, 1], [], []>} : vector<16x128xbf16>, vector<128x128xbf16>, vector<16x128xf32> -> vector<16x128xf32>
    %c0_30 = arith.constant 0 : index
    %c0_31 = arith.constant 0 : index
    %36 = vector.load %arg13[%c0_30, %c0_31] : memref<1x128xf32, #tpu.memory_space<vmem>>, vector<1x128xf32>
    %37 = vector.broadcast %36 : vector<1x128xf32> to vector<16x128xf32>
    %38 = arith.addf %35, %37 : vector<16x128xf32>
    %39 = vector.extract_strided_slice %38 {offsets = [0, 0], sizes = [16, 2], strides = [1, 1]} : vector<16x128xf32> to vector<16x2xf32>
    %40 = arith.mulf %39, %39 : vector<16x2xf32>
    %cst_32 = arith.constant dense<0.000000e+00> : vector<16xf32>
    %41 = vector.multi_reduction <add>, %40, %cst_32 [1] : vector<16x2xf32> to vector<16xf32>
    %42 = vector.shape_cast %41 : vector<16xf32> to vector<16x1xf32>
    %cst_33 = arith.constant 9.99999996E-13 : f32
    %43 = vector.broadcast %cst_33 : f32 to vector<16x1xf32>
    %44 = arith.addf %42, %43 : vector<16x1xf32>
    %45 = math.rsqrt %44 : vector<16x1xf32>
    %46 = vector.broadcast %45 : vector<16x1xf32> to vector<16x2xf32>
    %47 = arith.mulf %39, %46 : vector<16x2xf32>
    %c0_34 = arith.constant 0 : index
    %c0_35 = arith.constant 0 : index
    %48 = vector.load %arg14[%c0_34, %c0_35] : memref<16x2xf32, #tpu.memory_space<vmem>>, vector<16x2xf32>
    tpu.vector_store %arg14[%c0_34, %c0_35], %47 {strides = array<i32>} : memref<16x2xf32, #tpu.memory_space<vmem>>, vector<16x2xf32>,
    return
  }
  func.func @transform_0(%arg0: i32) -> (i32, i32) {
    %c0_i32 = arith.constant 0 : i32
    %c0_i32_0 = arith.constant 0 : i32
    return %arg0, %c0_i32 : i32, i32
  }
  func.func @transform_1(%arg0: i32) -> (i32, i32) {
    %c0_i32 = arith.constant 0 : i32
    %c0_i32_0 = arith.constant 0 : i32
    return %arg0, %c0_i32 : i32, i32
  }
  func.func @transform_2(%arg0: i32) -> (i32, i32) {
    %c0_i32 = arith.constant 0 : i32
    %c0_i32_0 = arith.constant 0 : i32
    return %arg0, %c0_i32 : i32, i32
  }
  func.func @transform_3(%arg0: i32) -> (i32, i32) {
    %c0_i32 = arith.constant 0 : i32
    %c0_i32_0 = arith.constant 0 : i32
    %c0_i32_1 = arith.constant 0 : i32
    return %c0_i32, %c0_i32_0 : i32, i32
  }
  func.func @transform_4(%arg0: i32) -> (i32, i32) {
    %c0_i32 = arith.constant 0 : i32
    %c0_i32_0 = arith.constant 0 : i32
    %c0_i32_1 = arith.constant 0 : i32
    return %c0_i32, %c0_i32_0 : i32, i32
  }
  func.func @transform_5(%arg0: i32) -> (i32, i32) {
    %c0_i32 = arith.constant 0 : i32
    %c0_i32_0 = arith.constant 0 : i32
    %c0_i32_1 = arith.constant 0 : i32
    return %c0_i32, %c0_i32_0 : i32, i32
  }
  func.func @transform_6(%arg0: i32) -> (i32, i32) {
    %c0_i32 = arith.constant 0 : i32
    %c0_i32_0 = arith.constant 0 : i32
    %c0_i32_1 = arith.constant 0 : i32
    return %c0_i32, %c0_i32_0 : i32, i32
  }
  func.func @transform_7(%arg0: i32) -> (i32, i32) {
    %c0_i32 = arith.constant 0 : i32
    %c0_i32_0 = arith.constant 0 : i32
    %c0_i32_1 = arith.constant 0 : i32
    return %c0_i32, %c0_i32_0 : i32, i32
  }
  func.func @transform_8(%arg0: i32) -> (i32, i32) {
    %c0_i32 = arith.constant 0 : i32
    %c0_i32_0 = arith.constant 0 : i32
    %c0_i32_1 = arith.constant 0 : i32
    return %c0_i32, %c0_i32_0 : i32, i32
  }
  func.func @transform_9(%arg0: i32) -> (i32, i32) {
    %c0_i32 = arith.constant 0 : i32
    %c0_i32_0 = arith.constant 0 : i32
    %c0_i32_1 = arith.constant 0 : i32
    return %c0_i32, %c0_i32_0 : i32, i32
  }
  func.func @transform_10(%arg0: i32) -> (i32, i32) {
    %c0_i32 = arith.constant 0 : i32
    %c0_i32_0 = arith.constant 0 : i32
    %c0_i32_1 = arith.constant 0 : i32
    return %c0_i32, %c0_i32_0 : i32, i32
  }
  func.func @transform_11(%arg0: i32) -> (i32, i32) {
    %c0_i32 = arith.constant 0 : i32
    %c0_i32_0 = arith.constant 0 : i32
    %c0_i32_1 = arith.constant 0 : i32
    return %c0_i32, %c0_i32_0 : i32, i32
  }
  func.func @transform_12(%arg0: i32) -> (i32, i32) {
    %c0_i32 = arith.constant 0 : i32
    %c0_i32_0 = arith.constant 0 : i32
    %c0_i32_1 = arith.constant 0 : i32
    return %c0_i32, %c0_i32_0 : i32, i32
  }
  func.func @transform_13(%arg0: i32) -> (i32, i32) {
    %c0_i32 = arith.constant 0 : i32
    %c0_i32_0 = arith.constant 0 : i32
    return %arg0, %c0_i32 : i32, i32
  }
}

</mosaic_0001>

<llo_original>
// kernel: tpu_custom_call.1
$region0: #{tpu_custom_call.1}
  #allocation0 [shape = 'u32[]', space=smem, size = 0x4, offset = 0x4, fixed_abs, tag = 'smem constant byte address 0x4 - core index']
  #allocation1 [shape = 'u32[144,128]{1,0:T(1,128)}', space=vmem, size = 0x12000, scoped, tag = 'internal scratch']
  %s0 = inlined_call_operand.hbm [shape: f32[32,512], index: 0, kind: input, shape index: {}]
  %s1 = inlined_call_operand.hbm [shape: f32[32,512], index: 1, kind: input, shape index: {}]
  %s2 = inlined_call_operand.vmem [shape: f32[32,16], index: 2, kind: input, shape index: {}]
  %s3 = inlined_call_operand.vmem [shape: bf16[16,64], index: 3, kind: input, shape index: {}]
  %s4 = inlined_call_operand.vmem [shape: f32[1,64], index: 4, kind: input, shape index: {}]
  %s5 = inlined_call_operand.hbm [shape: bf16[64,64], index: 5, kind: input, shape index: {}]
  %s6 = inlined_call_operand.vmem [shape: f32[1,64], index: 6, kind: input, shape index: {}]
  %s7 = inlined_call_operand.hbm [shape: bf16[512,128], index: 7, kind: input, shape index: {}]
  %s8 = inlined_call_operand.hbm [shape: bf16[512,128], index: 8, kind: input, shape index: {}]
  %s9 = inlined_call_operand.hbm [shape: bf16[64,128], index: 9, kind: input, shape index: {}]
  %s10 = inlined_call_operand.vmem [shape: f32[1,128], index: 10, kind: input, shape index: {}]
  %s11 = inlined_call_operand.vmem [shape: bf16[128,128], index: 11, kind: input, shape index: {}]
  %s12 = inlined_call_operand.vmem [shape: f32[1,128], index: 12, kind: input, shape index: {}]
  %s13 = inlined_call_operand.vmem [shape: f32[32,2], index: 13, kind: output, shape index: {}]
  %s14 = sld [smem:[#allocation0]]
  $region109: #{tpu_custom_call.1} parent=0
    _
  %s16 = ssub.s32 1, %s14
  %s17 = scalar_select 0, %s16, %s14
  $region1: #{tpu_custom_call.1} parent=0
    #allocation2 [shape = 'u8[65536]{0}', space=vmem, size = 0x10000, scoped, tag = 'input window, operand 0']
    #allocation3 [shape = 's32[2]{0}', space=sflag, size = 0x8, scoped, tag = 'scoped memory for tpu_custom_call.1']
    #allocation4 [shape = 'u8[65536]{0}', space=vmem, size = 0x10000, scoped, tag = 'input window, operand 1']
    #allocation5 [shape = 's32[2]{0}', space=sflag, size = 0x8, scoped, tag = 'scoped memory for tpu_custom_call.1']
    #allocation6 [shape = 'u8[16384]{0}', space=vmem, size = 0x4000, scoped, tag = 'input window, operand 5, single buffered']
    #allocation7 [shape = 'u8[131072]{0}', space=vmem, size = 0x20000, scoped, tag = 'input window, operand 7, single buffered']
    #allocation8 [shape = 's32[1]{0}', space=sflag, size = 0x4, scoped, tag = 'scoped memory for tpu_custom_call.1']
    #allocation9 [shape = 'u8[131072]{0}', space=vmem, size = 0x20000, scoped, tag = 'input window, operand 8, single buffered']
    #allocation10 [shape = 'u8[16384]{0}', space=vmem, size = 0x4000, scoped, tag = 'input window, operand 9, single buffered']
    #allocation11 [shape = 's32[1]{0}', space=sflag, size = 0x4, scoped, tag = 'scoped memory for tpu_custom_call.1']
    %18 = vsyncpa [#allocation3], 0
    %s19 = scalar_lea.sflag [#allocation3], 1
    %20 = vsyncpa %s19, 0
    %21 = vsyncpa [#allocation5], 0
    %s22 = scalar_lea.sflag [#allocation5], 1
    %23 = vsyncpa %s22, 0
    %24 = vsyncpa [#allocation8], 0
    %25 = vsyncpa [#allocation11], 0
    loop: start=0, step=1, limit=4
    $region2: #{tpu_custom_call.1} parent=1 // loop_pre_header
      _
    $region3: #{tpu_custom_call.1} parent=1 // loop_header
      %s27 = sphi 0, %s31
      %p28 = scmp.ge.s32.totalorder %s27, 4
      %s37 = sphi 0, %s39
      %s40 = sphi 0, %s37
      %s41 = sphi 0, %s40
      %s57 = sphi 0, %s41
      %s63 = sphi 0, %s65
      %s66 = sphi 0, %s63
      %s67 = sphi 0, %s66
      %s83 = sphi 0, %s67
      %s89 = sphi 0, %s91
      %s92 = sphi 0, %s89
      %s93 = sphi 0, %s92
      %s109 = sphi 0, %s93
      %s113 = sphi 0, %s113
      %s115 = sphi 0, %s113
      %s116 = sphi 0, %s115
      %s130 = sphi 0, %s116
      %s134 = sphi 0, %s134
      %s136 = sphi 0, %s134
      %s137 = sphi 0, %s136
      %s151 = sphi 0, %s137
      %s155 = sphi 0, %s155
      %s157 = sphi 0, %s155
      %s158 = sphi 0, %s157
      %s172 = sphi 0, %s158
      %s176 = sphi 0, %s176
      %s178 = sphi 0, %s176
      %s179 = sphi 0, %s178
      %s193 = sphi 0, %s179
      %s197 = sphi 0, %s197
      %s199 = sphi 0, %s197
      %s200 = sphi 0, %s199
      %s214 = sphi 0, %s200
      %s218 = sphi 0, %s218
      %s220 = sphi 0, %s218
      %s221 = sphi 0, %s220
      %s235 = sphi 0, %s221
      %s239 = sphi 0, %s239
      %s241 = sphi 0, %s239
      %s242 = sphi 0, %s241
      %s256 = sphi 0, %s242
      %s260 = sphi 0, %s260
      %s262 = sphi 0, %s260
      %s263 = sphi 0, %s262
      %s277 = sphi 0, %s263
      %s281 = sphi 0, %s281
      %s283 = sphi 0, %s281
      %s284 = sphi 0, %s283
      %s298 = sphi 0, %s284
      %s302 = sphi 0, %s302
      %s304 = sphi 0, %s302
      %s305 = sphi 0, %s304
      %s319 = sphi 0, %s305
      %s325 = sphi 0, %s327
      %s328 = sphi 0, %s325
      %s329 = sphi 0, %s328
      %s345 = sphi 0, %s329
    $region4: #{tpu_custom_call.1} parent=1 // loop_header_branch
      %30 = sbr.rel (%p28) target = $region8
    $region5: #{tpu_custom_call.1} parent=1 // loop_body
      %s32 = ssub.s32 %s27, 1
      %s33 = ssub.s32 %s27, 2
      %s34 = sadd.s32 %s27, 1
      %s35 = ssub.s32 %s27, %s34
      %p36 = scmp.eq.s32.totalorder %s35, 0
      %s38 = sadd.s32 %s37, 1
      %s39 = scalar_select %p36, %s37, %s38
      %p42 = pneg %p36
      %p43 = scmp.eq.s32.totalorder %s27, 1
      %p44 = por %p42, %p43
      %p45 = scmp.ne.s32.totalorder %s37, %s40
      %p46 = scmp.eq.s32.totalorder %s27, 0
      %p47 = por %p45, %p46
      %p48 = scmp.ne.s32.totalorder %s37, %s40
      %p49 = scmp.eq.s32.totalorder %s32, 1
      %p50 = por %p48, %p49
      %p51 = scmp.ne.s32.totalorder %s40, %s41
      %p52 = scmp.eq.s32.totalorder %s32, 0
      %p53 = por %p51, %p52
      %p54 = scmp.ne.s32.totalorder %s40, %s41
      %p55 = scmp.eq.s32.totalorder %s33, 1
      %p56 = por %p54, %p55
      %p58 = scmp.ne.s32.totalorder %s41, %s57
      %p59 = scmp.eq.s32.totalorder %s33, 0
      %p60 = por %p58, %p59
      %s61 = ssub.s32 %s27, %s34
      %p62 = scmp.eq.s32.totalorder %s61, 0
      %s64 = sadd.s32 %s63, 1
      %s65 = scalar_select %p62, %s63, %s64
      %p68 = pneg %p62
      %p69 = scmp.eq.s32.totalorder %s27, 1
      %p70 = por %p68, %p69
      %p71 = scmp.ne.s32.totalorder %s63, %s66
      %p72 = scmp.eq.s32.totalorder %s27, 0
      %p73 = por %p71, %p72
      %p74 = scmp.ne.s32.totalorder %s63, %s66
      %p75 = scmp.eq.s32.totalorder %s32, 1
      %p76 = por %p74, %p75
      %p77 = scmp.ne.s32.totalorder %s66, %s67
      %p78 = scmp.eq.s32.totalorder %s32, 0
      %p79 = por %p77, %p78
      %p80 = scmp.ne.s32.totalorder %s66, %s67
      %p81 = scmp.eq.s32.totalorder %s33, 1
      %p82 = por %p80, %p81
      %p84 = scmp.ne.s32.totalorder %s67, %s83
      %p85 = scmp.eq.s32.totalorder %s33, 0
      %p86 = por %p84, %p85
      %s87 = ssub.s32 %s27, %s34
      %p88 = scmp.eq.s32.totalorder %s87, 0
      %s90 = sadd.s32 %s89, 1
      %s91 = scalar_select %p88, %s89, %s90
      %p94 = pneg %p88
      %p95 = scmp.eq.s32.totalorder %s27, 1
      %p96 = por %p94, %p95
      %p97 = scmp.ne.s32.totalorder %s89, %s92
      %p98 = scmp.eq.s32.totalorder %s27, 0
      %p99 = por %p97, %p98
      %p100 = scmp.ne.s32.totalorder %s89, %s92
      %p101 = scmp.eq.s32.totalorder %s32, 1
      %p102 = por %p100, %p101
      %p103 = scmp.ne.s32.totalorder %s92, %s93
      %p104 = scmp.eq.s32.totalorder %s32, 0
      %p105 = por %p103, %p104
      %p106 = scmp.ne.s32.totalorder %s92, %s93
      %p107 = scmp.eq.s32.totalorder %s33, 1
      %p108 = por %p106, %p107
      %p110 = scmp.ne.s32.totalorder %s93, %s109
      %p111 = scmp.eq.s32.totalorder %s33, 0
      %p112 = por %p110, %p111
      %s114 = sadd.s32 %s113, 1
      %p117 = scmp.eq.s32.totalorder %s27, 1
      %p118 = scmp.ne.s32.totalorder %s113, %s115
      %p119 = scmp.eq.s32.totalorder %s27, 0
      %p120 = por %p118, %p119
      %p121 = scmp.ne.s32.totalorder %s113, %s115
      %p122 = scmp.eq.s32.totalorder %s32, 1
      %p123 = por %p121, %p122
      %p124 = scmp.ne.s32.totalorder %s115, %s116
      %p125 = scmp.eq.s32.totalorder %s32, 0
      %p126 = por %p124, %p125
      %p127 = scmp.ne.s32.totalorder %s115, %s116
      %p128 = scmp.eq.s32.totalorder %s33, 1
      %p129 = por %p127, %p128
      %p131 = scmp.ne.s32.totalorder %s116, %s130
      %p132 = scmp.eq.s32.totalorder %s33, 0
      %p133 = por %p131, %p132
      %s135 = sadd.s32 %s134, 1
      %p138 = scmp.eq.s32.totalorder %s27, 1
      %p139 = scmp.ne.s32.totalorder %s134, %s136
      %p140 = scmp.eq.s32.totalorder %s27, 0
      %p141 = por %p139, %p140
      %p142 = scmp.ne.s32.totalorder %s134, %s136
      %p143 = scmp.eq.s32.totalorder %s32, 1
      %p144 = por %p142, %p143
      %p145 = scmp.ne.s32.totalorder %s136, %s137
      %p146 = scmp.eq.s32.totalorder %s32, 0
      %p147 = por %p145, %p146
      %p148 = scmp.ne.s32.totalorder %s136, %s137
      %p149 = scmp.eq.s32.totalorder %s33, 1
      %p150 = por %p148, %p149
      %p152 = scmp.ne.s32.totalorder %s137, %s151
      %p153 = scmp.eq.s32.totalorder %s33, 0
      %p154 = por %p152, %p153
      %s156 = sadd.s32 %s155, 1
      %p159 = scmp.eq.s32.totalorder %s27, 1
      %p160 = scmp.ne.s32.totalorder %s155, %s157
      %p161 = scmp.eq.s32.totalorder %s27, 0
      %p162 = por %p160, %p161
      %p163 = scmp.ne.s32.totalorder %s155, %s157
      %p164 = scmp.eq.s32.totalorder %s32, 1
      %p165 = por %p163, %p164
      %p166 = scmp.ne.s32.totalorder %s157, %s158
      %p167 = scmp.eq.s32.totalorder %s32, 0
      %p168 = por %p166, %p167
      %p169 = scmp.ne.s32.totalorder %s157, %s158
      %p170 = scmp.eq.s32.totalorder %s33, 1
      %p171 = por %p169, %p170
      %p173 = scmp.ne.s32.totalorder %s158, %s172
      %p174 = scmp.eq.s32.totalorder %s33, 0
      %p175 = por %p173, %p174
      %s177 = sadd.s32 %s176, 1
      %p180 = scmp.eq.s32.totalorder %s27, 1
      %p181 = scmp.ne.s32.totalorder %s176, %s178
      %p182 = scmp.eq.s32.totalorder %s27, 0
      %p183 = por %p181, %p182
      %p184 = scmp.ne.s32.totalorder %s176, %s178
      %p185 = scmp.eq.s32.totalorder %s32, 1
      %p186 = por %p184, %p185
      %p187 = scmp.ne.s32.totalorder %s178, %s179
      %p188 = scmp.eq.s32.totalorder %s32, 0
      %p189 = por %p187, %p188
      %p190 = scmp.ne.s32.totalorder %s178, %s179
      %p191 = scmp.eq.s32.totalorder %s33, 1
      %p192 = por %p190, %p191
      %p194 = scmp.ne.s32.totalorder %s179, %s193
      %p195 = scmp.eq.s32.totalorder %s33, 0
      %p196 = por %p194, %p195
      %s198 = sadd.s32 %s197, 1
      %p201 = scmp.eq.s32.totalorder %s27, 1
      %p202 = scmp.ne.s32.totalorder %s197, %s199
      %p203 = scmp.eq.s32.totalorder %s27, 0
      %p204 = por %p202, %p203
      %p205 = scmp.ne.s32.totalorder %s197, %s199
      %p206 = scmp.eq.s32.totalorder %s32, 1
      %p207 = por %p205, %p206
      %p208 = scmp.ne.s32.totalorder %s199, %s200
      %p209 = scmp.eq.s32.totalorder %s32, 0
      %p210 = por %p208, %p209
      %p211 = scmp.ne.s32.totalorder %s199, %s200
      %p212 = scmp.eq.s32.totalorder %s33, 1
      %p213 = por %p211, %p212
      %p215 = scmp.ne.s32.totalorder %s200, %s214
      %p216 = scmp.eq.s32.totalorder %s33, 0
      %p217 = por %p215, %p216
      %s219 = sadd.s32 %s218, 1
      %p222 = scmp.eq.s32.totalorder %s27, 1
      %p223 = scmp.ne.s32.totalorder %s218, %s220
      %p224 = scmp.eq.s32.totalorder %s27, 0
      %p225 = por %p223, %p224
      %p226 = scmp.ne.s32.totalorder %s218, %s220
      %p227 = scmp.eq.s32.totalorder %s32, 1
      %p228 = por %p226, %p227
      %p229 = scmp.ne.s32.totalorder %s220, %s221
      %p230 = scmp.eq.s32.totalorder %s32, 0
      %p231 = por %p229, %p230
      %p232 = scmp.ne.s32.totalorder %s220, %s221
      %p233 = scmp.eq.s32.totalorder %s33, 1
      %p234 = por %p232, %p233
      %p236 = scmp.ne.s32.totalorder %s221, %s235
      %p237 = scmp.eq.s32.totalorder %s33, 0
      %p238 = por %p236, %p237
      %s240 = sadd.s32 %s239, 1
      %p243 = scmp.eq.s32.totalorder %s27, 1
      %p244 = scmp.ne.s32.totalorder %s239, %s241
      %p245 = scmp.eq.s32.totalorder %s27, 0
      %p246 = por %p244, %p245
      %p247 = scmp.ne.s32.totalorder %s239, %s241
      %p248 = scmp.eq.s32.totalorder %s32, 1
      %p249 = por %p247, %p248
      %p250 = scmp.ne.s32.totalorder %s241, %s242
      %p251 = scmp.eq.s32.totalorder %s32, 0
      %p252 = por %p250, %p251
      %p253 = scmp.ne.s32.totalorder %s241, %s242
      %p254 = scmp.eq.s32.totalorder %s33, 1
      %p255 = por %p253, %p254
      %p257 = scmp.ne.s32.totalorder %s242, %s256
      %p258 = scmp.eq.s32.totalorder %s33, 0
      %p259 = por %p257, %p258
      %s261 = sadd.s32 %s260, 1
      %p264 = scmp.eq.s32.totalorder %s27, 1
      %p265 = scmp.ne.s32.totalorder %s260, %s262
      %p266 = scmp.eq.s32.totalorder %s27, 0
      %p267 = por %p265, %p266
      %p268 = scmp.ne.s32.totalorder %s260, %s262
      %p269 = scmp.eq.s32.totalorder %s32, 1
      %p270 = por %p268, %p269
      %p271 = scmp.ne.s32.totalorder %s262, %s263
      %p272 = scmp.eq.s32.totalorder %s32, 0
      %p273 = por %p271, %p272
      %p274 = scmp.ne.s32.totalorder %s262, %s263
      %p275 = scmp.eq.s32.totalorder %s33, 1
      %p276 = por %p274, %p275
      %p278 = scmp.ne.s32.totalorder %s263, %s277
      %p279 = scmp.eq.s32.totalorder %s33, 0
      %p280 = por %p278, %p279
      %s282 = sadd.s32 %s281, 1
      %p285 = scmp.eq.s32.totalorder %s27, 1
      %p286 = scmp.ne.s32.totalorder %s281, %s283
      %p287 = scmp.eq.s32.totalorder %s27, 0
      %p288 = por %p286, %p287
      %p289 = scmp.ne.s32.totalorder %s281, %s283
      %p290 = scmp.eq.s32.totalorder %s32, 1
      %p291 = por %p289, %p290
      %p292 = scmp.ne.s32.totalorder %s283, %s284
      %p293 = scmp.eq.s32.totalorder %s32, 0
      %p294 = por %p292, %p293
      %p295 = scmp.ne.s32.totalorder %s283, %s284
      %p296 = scmp.eq.s32.totalorder %s33, 1
      %p297 = por %p295, %p296
      %p299 = scmp.ne.s32.totalorder %s284, %s298
      %p300 = scmp.eq.s32.totalorder %s33, 0
      %p301 = por %p299, %p300
      %s303 = sadd.s32 %s302, 1
      %p306 = scmp.eq.s32.totalorder %s27, 1
      %p307 = scmp.ne.s32.totalorder %s302, %s304
      %p308 = scmp.eq.s32.totalorder %s27, 0
      %p309 = por %p307, %p308
      %p310 = scmp.ne.s32.totalorder %s302, %s304
      %p311 = scmp.eq.s32.totalorder %s32, 1
      %p312 = por %p310, %p311
      %p313 = scmp.ne.s32.totalorder %s304, %s305
      %p314 = scmp.eq.s32.totalorder %s32, 0
      %p315 = por %p313, %p314
      %p316 = scmp.ne.s32.totalorder %s304, %s305
      %p317 = scmp.eq.s32.totalorder %s33, 1
      %p318 = por %p316, %p317
      %p320 = scmp.ne.s32.totalorder %s305, %s319
      %p321 = scmp.eq.s32.totalorder %s33, 0
      %p322 = por %p320, %p321
      %s323 = ssub.s32 %s27, %s34
      %p324 = scmp.eq.s32.totalorder %s323, 0
      %s326 = sadd.s32 %s325, 1
      %s327 = scalar_select %p324, %s325, %s326
      %p330 = pneg %p324
      %p331 = scmp.eq.s32.totalorder %s27, 1
      %p332 = por %p330, %p331
      %p333 = scmp.ne.s32.totalorder %s325, %s328
      %p334 = scmp.eq.s32.totalorder %s27, 0
      %p335 = por %p333, %p334
      %p336 = scmp.ne.s32.totalorder %s325, %s328
      %p337 = scmp.eq.s32.totalorder %s32, 1
      %p338 = por %p336, %p337
      %p339 = scmp.ne.s32.totalorder %s328, %s329
      %p340 = scmp.eq.s32.totalorder %s32, 0
      %p341 = por %p339, %p340
      %p342 = scmp.ne.s32.totalorder %s328, %s329
      %p343 = scmp.eq.s32.totalorder %s33, 1
      %p344 = por %p342, %p343
      %p346 = scmp.ne.s32.totalorder %s329, %s345
      %p347 = scmp.eq.s32.totalorder %s33, 0
      %p348 = por %p346, %p347
      %p349 = scmp.le.s32.totalorder 1, %s27
      %p350 = scmp.lt.s32.totalorder %s27, 3
      %p351 = pnand %p349, %p350
      %p352 = pneg %p351
      // Predicated region
      $region9: #{tpu_custom_call.1} parent=5 // pred_check
        _
      $region10: #{tpu_custom_call.1} parent=5 // pred_check_branch
        %354 = sbr.rel (%p351) target = $region12
      $region11: #{tpu_custom_call.1} parent=5 // pred_region
        %s355 = ssub.s32 %s27, 1
        // Predicated region
        $region13: #{tpu_custom_call.1} parent=11 // pred_check
          %p356 = pneg %p126
        $region14: #{tpu_custom_call.1} parent=11 // pred_check_branch
          %358 = sbr.rel (%p356) target = $region16
        $region15: #{tpu_custom_call.1} parent=11 // pred_region
          _
        $region16: #{tpu_custom_call.1} parent=11 // pred_fallthru
          _
        // Predicated region
        $region17: #{tpu_custom_call.1} parent=11 // pred_check
          %p359 = pneg %p147
        $region18: #{tpu_custom_call.1} parent=11 // pred_check_branch
          %361 = sbr.rel (%p359) target = $region20
        $region19: #{tpu_custom_call.1} parent=11 // pred_region
          _
        $region20: #{tpu_custom_call.1} parent=11 // pred_fallthru
          _
        // Predicated region
        $region21: #{tpu_custom_call.1} parent=11 // pred_check
          %p362 = pneg %p168
        $region22: #{tpu_custom_call.1} parent=11 // pred_check_branch
          %364 = sbr.rel (%p362) target = $region24
        $region23: #{tpu_custom_call.1} parent=11 // pred_region
          %s366 = ssub.s32 512, 512
          %367 = vsyncadd [#allocation5], %s366
          %s368 = sshll.u32 [#allocation6], 4
          %s369 = int_to_ptr.vmem [resolvable:$true] %s368
          %374 = dma.hbm_to_vmem [thread:$0]  %s5, 512, %s369, [#allocation5], 64, 64, 4
        $region24: #{tpu_custom_call.1} parent=11 // pred_fallthru
          _
        // Predicated region
        $region25: #{tpu_custom_call.1} parent=11 // pred_check
          %p375 = pneg %p189
        $region26: #{tpu_custom_call.1} parent=11 // pred_check_branch
          %377 = sbr.rel (%p375) target = $region28
        $region27: #{tpu_custom_call.1} parent=11 // pred_region
          _
        $region28: #{tpu_custom_call.1} parent=11 // pred_fallthru
          _
        // Predicated region
        $region29: #{tpu_custom_call.1} parent=11 // pred_check
          %p378 = pneg %p210
        $region30: #{tpu_custom_call.1} parent=11 // pred_check_branch
          %380 = sbr.rel (%p378) target = $region32
        $region31: #{tpu_custom_call.1} parent=11 // pred_region
          %s382 = ssub.s32 4096, 4096
          %383 = vsyncadd [#allocation8], %s382
          %s384 = sshll.u32 [#allocation7], 4
          %s385 = int_to_ptr.vmem [resolvable:$true] %s384
          %390 = dma.hbm_to_vmem [thread:$0]  %s7, 4096, %s385, [#allocation8], 64, 64, 4
        $region32: #{tpu_custom_call.1} parent=11 // pred_fallthru
          _
        // Predicated region
        $region33: #{tpu_custom_call.1} parent=11 // pred_check
          %p391 = pneg %p231
        $region34: #{tpu_custom_call.1} parent=11 // pred_check_branch
          %393 = sbr.rel (%p391) target = $region36
        $region35: #{tpu_custom_call.1} parent=11 // pred_region
          %s395 = ssub.s32 4096, 4096
          %396 = vsyncadd [#allocation8], %s395
          %s397 = sshll.u32 [#allocation9], 4
          %s398 = int_to_ptr.vmem [resolvable:$true] %s397
          %403 = dma.hbm_to_vmem [thread:$0]  %s8, 4096, %s398, [#allocation8], 64, 64, 4
        $region36: #{tpu_custom_call.1} parent=11 // pred_fallthru
          _
        // Predicated region
        $region37: #{tpu_custom_call.1} parent=11 // pred_check
          %p404 = pneg %p252
        $region38: #{tpu_custom_call.1} parent=11 // pred_check_branch
          %406 = sbr.rel (%p404) target = $region40
        $region39: #{tpu_custom_call.1} parent=11 // pred_region
          %s408 = ssub.s32 512, 512
          %409 = vsyncadd [#allocation11], %s408
          %s410 = sshll.u32 [#allocation10], 4
          %s411 = int_to_ptr.vmem [resolvable:$true] %s410
          %416 = dma.hbm_to_vmem [thread:$0]  %s9, 512, %s411, [#allocation11], 64, 64, 4
        $region40: #{tpu_custom_call.1} parent=11 // pred_fallthru
          _
        // Predicated region
        $region41: #{tpu_custom_call.1} parent=11 // pred_check
          %p417 = pneg %p273
        $region42: #{tpu_custom_call.1} parent=11 // pred_check_branch
          %419 = sbr.rel (%p417) target = $region44
        $region43: #{tpu_custom_call.1} parent=11 // pred_region
          _
        $region44: #{tpu_custom_call.1} parent=11 // pred_fallthru
          _
        // Predicated region
        $region45: #{tpu_custom_call.1} parent=11 // pred_check
          %p420 = pneg %p294
        $region46: #{tpu_custom_call.1} parent=11 // pred_check_branch
          %422 = sbr.rel (%p420) target = $region48
        $region47: #{tpu_custom_call.1} parent=11 // pred_region
          _
        $region48: #{tpu_custom_call.1} parent=11 // pred_fallthru
          _
        // Predicated region
        $region49: #{tpu_custom_call.1} parent=11 // pred_check
          %p423 = pneg %p315
        $region50: #{tpu_custom_call.1} parent=11 // pred_check_branch
          %425 = sbr.rel (%p423) target = $region52
        $region51: #{tpu_custom_call.1} parent=11 // pred_region
          _
        $region52: #{tpu_custom_call.1} parent=11 // pred_fallthru
          _
      $region12: #{tpu_custom_call.1} parent=5 // pred_fallthru
        _
      %p426 = scmp.lt.s32.totalorder %s27, 2
      // Predicated region
      $region53: #{tpu_custom_call.1} parent=5 // pred_check
        %p427 = pneg %p426
      $region54: #{tpu_custom_call.1} parent=5 // pred_check_branch
        %429 = sbr.rel (%p427) target = $region56
      $region55: #{tpu_custom_call.1} parent=5 // pred_region
        // Predicated region
        $region57: #{tpu_custom_call.1} parent=55 // pred_check
          %p430 = pneg %p47
        $region58: #{tpu_custom_call.1} parent=55 // pred_check_branch
          %432 = sbr.rel (%p430) target = $region60
        $region59: #{tpu_custom_call.1} parent=55 // pred_region
          %s433 = sand.u32 %s37, 1
          %s434 = scalar_lea.sflag [#allocation3], %s433
          %s435 = sand.u32 %s37, 1
          %s436 = smul.addr %s435, 64
          %s437 = scalar_lea.vmem [#allocation2], %s436
          %s438 = smul.u32 2, %s27
          %s440 = ssub.s32 1024, 1024
          %441 = vsyncadd %s434, %s440
          %s442 = smul.addr %s438, 4
          %s443 = smul.addr %s442, 128
          %s444 = scalar_lea.hbm %s0, %s443
          %s445 = sshll.u32 %s437, 4
          %s446 = int_to_ptr.vmem [resolvable:$true] %s445
          %451 = dma.hbm_to_vmem [thread:$0]  %s444, 1024, %s446, %s434, 512, 512, 32
        $region60: #{tpu_custom_call.1} parent=55 // pred_fallthru
          _
        // Predicated region
        $region61: #{tpu_custom_call.1} parent=55 // pred_check
          %p452 = pneg %p73
        $region62: #{tpu_custom_call.1} parent=55 // pred_check_branch
          %454 = sbr.rel (%p452) target = $region64
        $region63: #{tpu_custom_call.1} parent=55 // pred_region
          %s455 = sand.u32 %s27, 1
          %s456 = scalar_lea.sflag [#allocation5], %s455
          %s457 = sand.u32 %s63, 1
          %s458 = smul.addr %s457, 64
          %s459 = scalar_lea.vmem [#allocation4], %s458
          %s460 = smul.u32 2, %s27
          %s462 = ssub.s32 1024, 1024
          %463 = vsyncadd %s456, %s462
          %s464 = smul.addr %s460, 4
          %s465 = smul.addr %s464, 128
          %s466 = scalar_lea.hbm %s1, %s465
          %s467 = sshll.u32 %s459, 4
          %s468 = int_to_ptr.vmem [resolvable:$true] %s467
          %473 = dma.hbm_to_vmem [thread:$0]  %s466, 1024, %s468, %s456, 512, 512, 32
        $region64: #{tpu_custom_call.1} parent=55 // pred_fallthru
          _
        // Predicated region
        $region65: #{tpu_custom_call.1} parent=55 // pred_check
          %p474 = pneg %p99
        $region66: #{tpu_custom_call.1} parent=55 // pred_check_branch
          %476 = sbr.rel (%p474) target = $region68
        $region67: #{tpu_custom_call.1} parent=55 // pred_region
          %s477 = smul.u32 2, %s27
          %p478 = scmp.lt.s32.totalorder %s477, 3
          %s479 = scalar_select %p478, %s477, 3
          %s480 = smul.addr %s479, 8
          %s481 = scalar_lea.vmem %s2, %s480
          %s482 = smul.u32 2, %s27
        $region68: #{tpu_custom_call.1} parent=55 // pred_fallthru
          _
      $region56: #{tpu_custom_call.1} parent=5 // pred_fallthru
        _
      %p483 = scmp.le.s32.totalorder 1, %s27
      %p484 = scmp.lt.s32.totalorder %s27, 3
      %p485 = pnand %p483, %p484
      %p486 = pneg %p485
      // Predicated region
      $region69: #{tpu_custom_call.1} parent=5 // pred_check
        _
      $region70: #{tpu_custom_call.1} parent=5 // pred_check_branch
        %488 = sbr.rel (%p485) target = $region72
      $region71: #{tpu_custom_call.1} parent=5 // pred_region
        %s489 = ssub.s32 %s27, 1
        %s490 = sand.u32 %s40, 1
        %s491 = scalar_lea.sflag [#allocation3], %s490
        %s492 = sand.u32 %s40, 1
        %s493 = smul.addr %s492, 64
        %s494 = scalar_lea.vmem [#allocation2], %s493
        // Predicated region
        $region73: #{tpu_custom_call.1} parent=71 // pred_check
          %p495 = pneg %p53
        $region74: #{tpu_custom_call.1} parent=71 // pred_check_branch
          %497 = sbr.rel (%p495) target = $region76
        $region75: #{tpu_custom_call.1} parent=71 // pred_region
          %498 = dma.done %s491, 1024
        $region76: #{tpu_custom_call.1} parent=71 // pred_fallthru
          _
        %s499 = sand.u32 %s32, 1
        %s500 = scalar_lea.sflag [#allocation5], %s499
        %s501 = sand.u32 %s66, 1
        %s502 = smul.addr %s501, 64
        %s503 = scalar_lea.vmem [#allocation4], %s502
        // Predicated region
        $region77: #{tpu_custom_call.1} parent=71 // pred_check
          %p504 = pneg %p79
        $region78: #{tpu_custom_call.1} parent=71 // pred_check_branch
          %506 = sbr.rel (%p504) target = $region80
        $region79: #{tpu_custom_call.1} parent=71 // pred_region
          %507 = dma.done %s500, 1024
        $region80: #{tpu_custom_call.1} parent=71 // pred_fallthru
          _
        // Predicated region
        $region81: #{tpu_custom_call.1} parent=71 // pred_check
          %p508 = pneg %p168
        $region82: #{tpu_custom_call.1} parent=71 // pred_check_branch
          %510 = sbr.rel (%p508) target = $region84
        $region83: #{tpu_custom_call.1} parent=71 // pred_region
          %511 = dma.done [#allocation5], 512
        $region84: #{tpu_custom_call.1} parent=71 // pred_fallthru
          _
        // Predicated region
        $region85: #{tpu_custom_call.1} parent=71 // pred_check
          %p512 = pneg %p210
        $region86: #{tpu_custom_call.1} parent=71 // pred_check_branch
          %514 = sbr.rel (%p512) target = $region88
        $region87: #{tpu_custom_call.1} parent=71 // pred_region
          %515 = dma.done [#allocation8], 4096
        $region88: #{tpu_custom_call.1} parent=71 // pred_fallthru
          _
        // Predicated region
        $region89: #{tpu_custom_call.1} parent=71 // pred_check
          %p516 = pneg %p231
        $region90: #{tpu_custom_call.1} parent=71 // pred_check_branch
          %518 = sbr.rel (%p516) target = $region92
        $region91: #{tpu_custom_call.1} parent=71 // pred_region
          %519 = dma.done [#allocation8], 4096
        $region92: #{tpu_custom_call.1} parent=71 // pred_fallthru
          _
        // Predicated region
        $region93: #{tpu_custom_call.1} parent=71 // pred_check
          %p520 = pneg %p252
        $region94: #{tpu_custom_call.1} parent=71 // pred_check_branch
          %522 = sbr.rel (%p520) target = $region96
        $region95: #{tpu_custom_call.1} parent=71 // pred_region
          %523 = dma.done [#allocation11], 512
        $region96: #{tpu_custom_call.1} parent=71 // pred_fallthru
          _
        %s524 = sand.u32 %s40, 1
        %s525 = scalar_lea.sflag [#allocation3], %s524
        %s526 = sand.u32 %s40, 1
        %s527 = smul.addr %s526, 64
        %s528 = scalar_lea.vmem [#allocation2], %s527
        %p529 = pneg %p53
        %p530 = pneg %p50
        %s531 = sand.u32 %s32, 1
        %s532 = scalar_lea.sflag [#allocation5], %s531
        %s533 = sand.u32 %s66, 1
        %s534 = smul.addr %s533, 64
        %s535 = scalar_lea.vmem [#allocation4], %s534
        %p536 = pneg %p79
        %p537 = pneg %p76
        %s538 = smul.u32 2, %s32
        %p539 = scmp.lt.s32.totalorder %s538, 3
        %s540 = scalar_select %p539, %s538, 3
        %s541 = smul.addr %s540, 8
        %s542 = scalar_lea.vmem %s2, %s541
        %p543 = pneg %p105
        %p544 = pneg %p102
        %p545 = pneg %p126
        %p546 = pneg %p123
        %p547 = pneg %p147
        %p548 = pneg %p144
        %p549 = pneg %p168
        %p550 = pneg %p165
        %p551 = pneg %p189
        %p552 = pneg %p186
        %p553 = pneg %p210
        %p554 = pneg %p207
        %p555 = pneg %p231
        %p556 = pneg %p228
        %p557 = pneg %p252
        %p558 = pneg %p249
        %p559 = pneg %p273
        %p560 = pneg %p270
        %p561 = pneg %p294
        %p562 = pneg %p291
        %p563 = pneg %p315
        %p564 = pneg %p312
        %p565 = pneg %p341
        %p566 = pneg %p338
        %s567 = smul.u32 2, %s32
        %p568 = scmp.lt.s32.totalorder %s567, 3
        %s569 = scalar_select %p568, %s567, 3
        %s570 = smul.addr %s569, 8
        %s571 = scalar_lea.vmem %s13, %s570
        %s572 = smul.u32 2, %s32
        %s573 = smul.u32 2, %s32
        %s574 = smul.u32 2, %s32
        %p575 = scmp.lt.s32.totalorder %s574, 3
        %s576 = scalar_select %p575, %s574, 3
        %s577 = smul.addr %s576, 8
        %s578 = scalar_lea.vmem %s2, %s577
        %s579 = smul.u32 2, %s32
        %s580 = smul.u32 2, %s32
        %p581 = scmp.lt.s32.totalorder %s580, 3
        %s582 = scalar_select %p581, %s580, 3
        %s583 = smul.addr %s582, 8
        %s584 = scalar_lea.vmem %s13, %s583
        %s585 = smul.u32 2, %s32
        %v587 = vld [vmem:[%s578] sm:$0xff]
        %v588 = vld [vmem:[%s578 + $0x8] sm:$0xff]
        %v589 = vpack.c.bf16 %v588, %v587
        %v590 = vld [vmem:[%s3] sm:$0xf]
        %v591 = vld [vmem:[%s3 + $0x4] sm:$0xf]
        %v592 = vld [vmem:[%s4] sm:$0x1]
        %v594 = vlaneseq
        %v595 = vshrl.u32 %v594, 7
        %v596 = vsub.s32 0, %v595
        %v597 = vrot.slane %v592, %v596
        %v601 = vunpack.c.l.b16 %v590
        %v602 = vunpack.c.l.b16 %v591
        %v603 = vpack.c.b16 %v602, %v601
        %vm605 = vcmask 130048
        %v607 = vsel %vm605, %v589, 0
        %609 = vmatprep.subr.bf16.mxu0 0
        %610 = vmatpush1.bf16.msra.mxu0 %v603
        %611 = vmatprep.subr.bf16.mxu0 0
        %612 = vmatpush1.bf16.msra.mxu0 0
        %613 = vmatprep.subr.bf16.mxu0 0
        %614 = vmatpush1.bf16.msra.mxu0 0
        %615 = vmatprep.subr.bf16.mxu0 0
        %616 = vmatpush1.bf16.msra.mxu0 0
        %617 = vmatprep.subr.bf16.mxu0 0
        %618 = vmatpush1.bf16.msra.mxu0 0
        %619 = vmatprep.subr.bf16.mxu0 0
        %620 = vmatpush1.bf16.msra.mxu0 0
        %621 = vmatprep.subr.bf16.mxu0 0
        %622 = vmatpush1.bf16.msra.mxu0 0
        %623 = vmatprep.subr.bf16.mxu0 0
        %624 = vmatpush1.bf16.msra.mxu0 0
        %625 = vmatprep.subr.bf16.mxu0 0
        %626 = vmatpush1.bf16.msra.mxu0 0
        %627 = vmatprep.subr.bf16.mxu0 0
        %628 = vmatpush1.bf16.msra.mxu0 0
        %629 = vmatprep.subr.bf16.mxu0 0
        %630 = vmatpush1.bf16.msra.mxu0 0
        %631 = vmatprep.subr.bf16.mxu0 0
        %632 = vmatpush1.bf16.msra.mxu0 0
        %633 = vmatprep.subr.bf16.mxu0 0
        %634 = vmatpush1.bf16.msra.mxu0 0
        %635 = vmatprep.subr.bf16.mxu0 0
        %636 = vmatpush1.bf16.msra.mxu0 0
        %637 = vmatprep.subr.bf16.mxu0 0
        %638 = vmatpush1.bf16.msra.mxu0 0
        %639 = vmatprep.subr.bf16.mxu0 0
        %640 = vmatpush1.bf16.msra.mxu0 0
        %641 = vmatprep.mubr.bf16.mxu0 0
        %642 = vmatmul.mubr.bf16.gmra.mrb[0].mxu0 %v607
        %v643 = vpop.f32.mrb[0].mxu0
        %v644 = vadd.f32 %v597, %v643
        %v645 = vpop.f32.mrb[0].mxu0
        %v646 = vpop.f32.mrb[0].mxu0
        %v647 = vadd.f32 %v597, %v646
        %v648 = vpop.f32.mrb[0].mxu0
        %649 = vdwg.mxu0
        %v650 = vmax.f32 %v644, 0.0
        %v651 = vmax.f32 %v647, 0.0
        %v652 = vpack.c.bf16 %v651, %v650
        %v653 = vld [vmem:[#allocation6] sm:$0xf]
        %v654 = vld [vmem:[#allocation6 + $0x4] sm:$0xf]
        %v655 = vld [vmem:[#allocation6 + $0x8] sm:$0xf]
        %v656 = vld [vmem:[#allocation6 + $0xc] sm:$0xf]
        %v657 = vld [vmem:[#allocation6 + $0x10] sm:$0xf]
        %v658 = vld [vmem:[#allocation6 + $0x14] sm:$0xf]
        %v659 = vld [vmem:[#allocation6 + $0x18] sm:$0xf]
        %v660 = vld [vmem:[#allocation6 + $0x1c] sm:$0xf]
        %v661 = vld [vmem:[%s6] sm:$0x1]
        %v663 = vlaneseq
        %v664 = vshrl.u32 %v663, 7
        %v665 = vsub.s32 0, %v664
        %v666 = vrot.slane %v661, %v665
        %v676 = vunpack.c.l.b16 %v653
        %v677 = vunpack.c.l.b16 %v654
        %v678 = vunpack.c.l.b16 %v655
        %v679 = vunpack.c.l.b16 %v656
        %v680 = vunpack.c.l.b16 %v657
        %v681 = vunpack.c.l.b16 %v658
        %v682 = vunpack.c.l.b16 %v659
        %v683 = vunpack.c.l.b16 %v660
        %v684 = vpack.c.b16 %v677, %v676
        %v685 = vpack.c.b16 %v679, %v678
        %v686 = vpack.c.b16 %v681, %v680
        %v687 = vpack.c.b16 %v683, %v682
        %vm692 = vcmask 523264
        %v694 = vsel %vm692, %v652, 0
        %696 = vmatprep.subr.bf16.mxu0 0
        %697 = vmatpush1.bf16.msra.mxu0 %v684
        %698 = vmatprep.subr.bf16.mxu0 0
        %699 = vmatpush1.bf16.msra.mxu0 %v685
        %700 = vmatprep.subr.bf16.mxu0 0
        %701 = vmatpush1.bf16.msra.mxu0 %v686
        %702 = vmatprep.subr.bf16.mxu0 0
        %703 = vmatpush1.bf16.msra.mxu0 %v687
        %704 = vmatprep.subr.bf16.mxu0 0
        %705 = vmatpush1.bf16.msra.mxu0 0
        %706 = vmatprep.subr.bf16.mxu0 0
        %707 = vmatpush1.bf16.msra.mxu0 0
        %708 = vmatprep.subr.bf16.mxu0 0
        %709 = vmatpush1.bf16.msra.mxu0 0
        %710 = vmatprep.subr.bf16.mxu0 0
        %711 = vmatpush1.bf16.msra.mxu0 0
        %712 = vmatprep.subr.bf16.mxu0 0
        %713 = vmatpush1.bf16.msra.mxu0 0
        %714 = vmatprep.subr.bf16.mxu0 0
        %715 = vmatpush1.bf16.msra.mxu0 0
        %716 = vmatprep.subr.bf16.mxu0 0
        %717 = vmatpush1.bf16.msra.mxu0 0
        %718 = vmatprep.subr.bf16.mxu0 0
        %719 = vmatpush1.bf16.msra.mxu0 0
        %720 = vmatprep.subr.bf16.mxu0 0
        %721 = vmatpush1.bf16.msra.mxu0 0
        %722 = vmatprep.subr.bf16.mxu0 0
        %723 = vmatpush1.bf16.msra.mxu0 0
        %724 = vmatprep.subr.bf16.mxu0 0
        %725 = vmatpush1.bf16.msra.mxu0 0
        %726 = vmatprep.subr.bf16.mxu0 0
        %727 = vmatpush1.bf16.msra.mxu0 0
        %728 = vmatprep.mubr.bf16.mxu0 0
        %729 = vmatmul.mubr.bf16.gmra.mrb[0].mxu0 %v694
        %v730 = vpop.f32.mrb[0].mxu0
        %v731 = vadd.f32 %v666, %v730
        %v732 = vpop.f32.mrb[0].mxu0
        %v733 = vpop.f32.mrb[0].mxu0
        %v734 = vadd.f32 %v666, %v733
        %v735 = vpop.f32.mrb[0].mxu0
        %736 = vdwg.mxu0
        %v737 = vld [vmem:[%s494] sm:$0xff]
        %v738 = vld [vmem:[%s494 + $0x8] sm:$0xff]
        %v739 = vld [vmem:[%s494 + $0x10] sm:$0xff]
        %v740 = vld [vmem:[%s494 + $0x18] sm:$0xff]
        %v741 = vld [vmem:[%s494 + $0x20] sm:$0xff]
        %v742 = vld [vmem:[%s494 + $0x28] sm:$0xff]
        %v743 = vld [vmem:[%s494 + $0x30] sm:$0xff]
        %v744 = vld [vmem:[%s494 + $0x38] sm:$0xff]
        %v745 = vpack.c.bf16 %v741, %v737
        %v746 = vpack.c.bf16 %v742, %v738
        %v747 = vpack.c.bf16 %v743, %v739
        %v748 = vpack.c.bf16 %v744, %v740
        %v749 = vld [vmem:[#allocation7] sm:$0xf]
        %v750 = vld [vmem:[#allocation7 + $0x4] sm:$0xf]
        %v751 = vld [vmem:[#allocation7 + $0x8] sm:$0xf]
        %v752 = vld [vmem:[#allocation7 + $0xc] sm:$0xf]
        %v753 = vld [vmem:[#allocation7 + $0x10] sm:$0xf]
        %v754 = vld [vmem:[#allocation7 + $0x14] sm:$0xf]
        %v755 = vld [vmem:[#allocation7 + $0x18] sm:$0xf]
        %v756 = vld [vmem:[#allocation7 + $0x1c] sm:$0xf]
        %v757 = vld [vmem:[#allocation7 + $0x20] sm:$0xf]
        %v758 = vld [vmem:[#allocation7 + $0x24] sm:$0xf]
        %v759 = vld [vmem:[#allocation7 + $0x28] sm:$0xf]
        %v760 = vld [vmem:[#allocation7 + $0x2c] sm:$0xf]
        %v761 = vld [vmem:[#allocation7 + $0x30] sm:$0xf]
        %v762 = vld [vmem:[#allocation7 + $0x34] sm:$0xf]
        %v763 = vld [vmem:[#allocation7 + $0x38] sm:$0xf]
        %v764 = vld [vmem:[#allocation7 + $0x3c] sm:$0xf]
        %v765 = vld [vmem:[#allocation7 + $0x40] sm:$0xf]
        %v766 = vld [vmem:[#allocation7 + $0x44] sm:$0xf]
        %v767 = vld [vmem:[#allocation7 + $0x48] sm:$0xf]
        %v768 = vld [vmem:[#allocation7 + $0x4c] sm:$0xf]
        %v769 = vld [vmem:[#allocation7 + $0x50] sm:$0xf]
        %v770 = vld [vmem:[#allocation7 + $0x54] sm:$0xf]
        %v771 = vld [vmem:[#allocation7 + $0x58] sm:$0xf]
        %v772 = vld [vmem:[#allocation7 + $0x5c] sm:$0xf]
        %v773 = vld [vmem:[#allocation7 + $0x60] sm:$0xf]
        %v774 = vld [vmem:[#allocation7 + $0x64] sm:$0xf]
        %v775 = vld [vmem:[#allocation7 + $0x68] sm:$0xf]
        %v776 = vld [vmem:[#allocation7 + $0x6c] sm:$0xf]
        %v777 = vld [vmem:[#allocation7 + $0x70] sm:$0xf]
        %v778 = vld [vmem:[#allocation7 + $0x74] sm:$0xf]
        %v779 = vld [vmem:[#allocation7 + $0x78] sm:$0xf]
        %v780 = vld [vmem:[#allocation7 + $0x7c] sm:$0xf]
        %v781 = vld [vmem:[#allocation7 + $0x80] sm:$0xf]
        %v782 = vld [vmem:[#allocation7 + $0x84] sm:$0xf]
        %v783 = vld [vmem:[#allocation7 + $0x88] sm:$0xf]
        %v784 = vld [vmem:[#allocation7 + $0x8c] sm:$0xf]
        %v785 = vld [vmem:[#allocation7 + $0x90] sm:$0xf]
        %v786 = vld [vmem:[#allocation7 + $0x94] sm:$0xf]
        %v787 = vld [vmem:[#allocation7 + $0x98] sm:$0xf]
        %v788 = vld [vmem:[#allocation7 + $0x9c] sm:$0xf]
        %v789 = vld [vmem:[#allocation7 + $0xa0] sm:$0xf]
        %v790 = vld [vmem:[#allocation7 + $0xa4] sm:$0xf]
        %v791 = vld [vmem:[#allocation7 + $0xa8] sm:$0xf]
        %v792 = vld [vmem:[#allocation7 + $0xac] sm:$0xf]
        %v793 = vld [vmem:[#allocation7 + $0xb0] sm:$0xf]
        %v794 = vld [vmem:[#allocation7 + $0xb4] sm:$0xf]
        %v795 = vld [vmem:[#allocation7 + $0xb8] sm:$0xf]
        %v796 = vld [vmem:[#allocation7 + $0xbc] sm:$0xf]
        %v797 = vld [vmem:[#allocation7 + $0xc0] sm:$0xf]
        %v798 = vld [vmem:[#allocation7 + $0xc4] sm:$0xf]
        %v799 = vld [vmem:[#allocation7 + $0xc8] sm:$0xf]
        %v800 = vld [vmem:[#allocation7 + $0xcc] sm:$0xf]
        %v801 = vld [vmem:[#allocation7 + $0xd0] sm:$0xf]
        %v802 = vld [vmem:[#allocation7 + $0xd4] sm:$0xf]
        %v803 = vld [vmem:[#allocation7 + $0xd8] sm:$0xf]
        %v804 = vld [vmem:[#allocation7 + $0xdc] sm:$0xf]
        %v805 = vld [vmem:[#allocation7 + $0xe0] sm:$0xf]
        %v806 = vld [vmem:[#allocation7 + $0xe4] sm:$0xf]
        %v807 = vld [vmem:[#allocation7 + $0xe8] sm:$0xf]
        %v808 = vld [vmem:[#allocation7 + $0xec] sm:$0xf]
        %v809 = vld [vmem:[#allocation7 + $0xf0] sm:$0xf]
        %v810 = vld [vmem:[#allocation7 + $0xf4] sm:$0xf]
        %v811 = vld [vmem:[#allocation7 + $0xf8] sm:$0xf]
        %v812 = vld [vmem:[#allocation7 + $0xfc] sm:$0xf]
        %v813 = vld [vmem:[%s503] sm:$0xff]
        %v814 = vld [vmem:[%s503 + $0x8] sm:$0xff]
        %v815 = vld [vmem:[%s503 + $0x10] sm:$0xff]
        %v816 = vld [vmem:[%s503 + $0x18] sm:$0xff]
        %v817 = vld [vmem:[%s503 + $0x20] sm:$0xff]
        %v818 = vld [vmem:[%s503 + $0x28] sm:$0xff]
        %v819 = vld [vmem:[%s503 + $0x30] sm:$0xff]
        %v820 = vld [vmem:[%s503 + $0x38] sm:$0xff]
        %v821 = vpack.c.bf16 %v817, %v813
        %v822 = vpack.c.bf16 %v818, %v814
        %v823 = vpack.c.bf16 %v819, %v815
        %v824 = vpack.c.bf16 %v820, %v816
        %v825 = vld [vmem:[#allocation9] sm:$0xf]
        %v826 = vld [vmem:[#allocation9 + $0x4] sm:$0xf]
        %v827 = vld [vmem:[#allocation9 + $0x8] sm:$0xf]
        %v828 = vld [vmem:[#allocation9 + $0xc] sm:$0xf]
        %v829 = vld [vmem:[#allocation9 + $0x10] sm:$0xf]
        %v830 = vld [vmem:[#allocation9 + $0x14] sm:$0xf]
        %v831 = vld [vmem:[#allocation9 + $0x18] sm:$0xf]
        %v832 = vld [vmem:[#allocation9 + $0x1c] sm:$0xf]
        %v833 = vld [vmem:[#allocation9 + $0x20] sm:$0xf]
        %v834 = vld [vmem:[#allocation9 + $0x24] sm:$0xf]
        %v835 = vld [vmem:[#allocation9 + $0x28] sm:$0xf]
        %v836 = vld [vmem:[#allocation9 + $0x2c] sm:$0xf]
        %v837 = vld [vmem:[#allocation9 + $0x30] sm:$0xf]
        %v838 = vld [vmem:[#allocation9 + $0x34] sm:$0xf]
        %v839 = vld [vmem:[#allocation9 + $0x38] sm:$0xf]
        %v840 = vld [vmem:[#allocation9 + $0x3c] sm:$0xf]
        %v841 = vld [vmem:[#allocation9 + $0x40] sm:$0xf]
        %v842 = vld [vmem:[#allocation9 + $0x44] sm:$0xf]
        %v843 = vld [vmem:[#allocation9 + $0x48] sm:$0xf]
        %v844 = vld [vmem:[#allocation9 + $0x4c] sm:$0xf]
        %v845 = vld [vmem:[#allocation9 + $0x50] sm:$0xf]
        %v846 = vld [vmem:[#allocation9 + $0x54] sm:$0xf]
        %v847 = vld [vmem:[#allocation9 + $0x58] sm:$0xf]
        %v848 = vld [vmem:[#allocation9 + $0x5c] sm:$0xf]
        %v849 = vld [vmem:[#allocation9 + $0x60] sm:$0xf]
        %v850 = vld [vmem:[#allocation9 + $0x64] sm:$0xf]
        %v851 = vld [vmem:[#allocation9 + $0x68] sm:$0xf]
        %v852 = vld [vmem:[#allocation9 + $0x6c] sm:$0xf]
        %v853 = vld [vmem:[#allocation9 + $0x70] sm:$0xf]
        %v854 = vld [vmem:[#allocation9 + $0x74] sm:$0xf]
        %v855 = vld [vmem:[#allocation9 + $0x78] sm:$0xf]
        %v856 = vld [vmem:[#allocation9 + $0x7c] sm:$0xf]
        %v857 = vld [vmem:[#allocation9 + $0x80] sm:$0xf]
        %v858 = vld [vmem:[#allocation9 + $0x84] sm:$0xf]
        %v859 = vld [vmem:[#allocation9 + $0x88] sm:$0xf]
        %v860 = vld [vmem:[#allocation9 + $0x8c] sm:$0xf]
        %v861 = vld [vmem:[#allocation9 + $0x90] sm:$0xf]
        %v862 = vld [vmem:[#allocation9 + $0x94] sm:$0xf]
        %v863 = vld [vmem:[#allocation9 + $0x98] sm:$0xf]
        %v864 = vld [vmem:[#allocation9 + $0x9c] sm:$0xf]
        %v865 = vld [vmem:[#allocation9 + $0xa0] sm:$0xf]
        %v866 = vld [vmem:[#allocation9 + $0xa4] sm:$0xf]
        %v867 = vld [vmem:[#allocation9 + $0xa8] sm:$0xf]
        %v868 = vld [vmem:[#allocation9 + $0xac] sm:$0xf]
        %v869 = vld [vmem:[#allocation9 + $0xb0] sm:$0xf]
        %v870 = vld [vmem:[#allocation9 + $0xb4] sm:$0xf]
        %v871 = vld [vmem:[#allocation9 + $0xb8] sm:$0xf]
        %v872 = vld [vmem:[#allocation9 + $0xbc] sm:$0xf]
        %v873 = vld [vmem:[#allocation9 + $0xc0] sm:$0xf]
        %v874 = vld [vmem:[#allocation9 + $0xc4] sm:$0xf]
        %v875 = vld [vmem:[#allocation9 + $0xc8] sm:$0xf]
        %v876 = vld [vmem:[#allocation9 + $0xcc] sm:$0xf]
        %v877 = vld [vmem:[#allocation9 + $0xd0] sm:$0xf]
        %v878 = vld [vmem:[#allocation9 + $0xd4] sm:$0xf]
        %v879 = vld [vmem:[#allocation9 + $0xd8] sm:$0xf]
        %v880 = vld [vmem:[#allocation9 + $0xdc] sm:$0xf]
        %v881 = vld [vmem:[#allocation9 + $0xe0] sm:$0xf]
        %v882 = vld [vmem:[#allocation9 + $0xe4] sm:$0xf]
        %v883 = vld [vmem:[#allocation9 + $0xe8] sm:$0xf]
        %v884 = vld [vmem:[#allocation9 + $0xec] sm:$0xf]
        %v885 = vld [vmem:[#allocation9 + $0xf0] sm:$0xf]
        %v886 = vld [vmem:[#allocation9 + $0xf4] sm:$0xf]
        %v887 = vld [vmem:[#allocation9 + $0xf8] sm:$0xf]
        %v888 = vld [vmem:[#allocation9 + $0xfc] sm:$0xf]
        %v953 = vunpack.c.l.b16 %v825
        %v954 = vunpack.c.l.b16 %v826
        %v955 = vunpack.c.l.b16 %v827
        %v956 = vunpack.c.l.b16 %v828
        %v957 = vunpack.c.l.b16 %v829
        %v958 = vunpack.c.l.b16 %v830
        %v959 = vunpack.c.l.b16 %v831
        %v960 = vunpack.c.l.b16 %v832
        %v961 = vunpack.c.l.b16 %v833
        %v962 = vunpack.c.l.b16 %v834
        %v963 = vunpack.c.l.b16 %v835
        %v964 = vunpack.c.l.b16 %v836
        %v965 = vunpack.c.l.b16 %v837
        %v966 = vunpack.c.l.b16 %v838
        %v967 = vunpack.c.l.b16 %v839
        %v968 = vunpack.c.l.b16 %v840
        %v969 = vunpack.c.l.b16 %v841
        %v970 = vunpack.c.l.b16 %v842
        %v971 = vunpack.c.l.b16 %v843
        %v972 = vunpack.c.l.b16 %v844
        %v973 = vunpack.c.l.b16 %v845
        %v974 = vunpack.c.l.b16 %v846
        %v975 = vunpack.c.l.b16 %v847
        %v976 = vunpack.c.l.b16 %v848
        %v977 = vunpack.c.l.b16 %v849
        %v978 = vunpack.c.l.b16 %v850
        %v979 = vunpack.c.l.b16 %v851
        %v980 = vunpack.c.l.b16 %v852
        %v981 = vunpack.c.l.b16 %v853
        %v982 = vunpack.c.l.b16 %v854
        %v983 = vunpack.c.l.b16 %v855
        %v984 = vunpack.c.l.b16 %v856
        %v985 = vunpack.c.l.b16 %v857
        %v986 = vunpack.c.l.b16 %v858
        %v987 = vunpack.c.l.b16 %v859
        %v988 = vunpack.c.l.b16 %v860
        %v989 = vunpack.c.l.b16 %v861
        %v990 = vunpack.c.l.b16 %v862
        %v991 = vunpack.c.l.b16 %v863
        %v992 = vunpack.c.l.b16 %v864
        %v993 = vunpack.c.l.b16 %v865
        %v994 = vunpack.c.l.b16 %v866
        %v995 = vunpack.c.l.b16 %v867
        %v996 = vunpack.c.l.b16 %v868
        %v997 = vunpack.c.l.b16 %v869
        %v998 = vunpack.c.l.b16 %v870
        %v999 = vunpack.c.l.b16 %v871
        %v1000 = vunpack.c.l.b16 %v872
        %v1001 = vunpack.c.l.b16 %v873
        %v1002 = vunpack.c.l.b16 %v874
        %v1003 = vunpack.c.l.b16 %v875
        %v1004 = vunpack.c.l.b16 %v876
        %v1005 = vunpack.c.l.b16 %v877
        %v1006 = vunpack.c.l.b16 %v878
        %v1007 = vunpack.c.l.b16 %v879
        %v1008 = vunpack.c.l.b16 %v880
        %v1009 = vunpack.c.l.b16 %v881
        %v1010 = vunpack.c.l.b16 %v882
        %v1011 = vunpack.c.l.b16 %v883
        %v1012 = vunpack.c.l.b16 %v884
        %v1013 = vunpack.c.l.b16 %v885
        %v1014 = vunpack.c.l.b16 %v886
        %v1015 = vunpack.c.l.b16 %v887
        %v1016 = vunpack.c.l.b16 %v888
        %v1017 = vpack.c.b16 %v954, %v953
        %v1018 = vpack.c.b16 %v956, %v955
        %v1019 = vpack.c.b16 %v958, %v957
        %v1020 = vpack.c.b16 %v960, %v959
        %v1021 = vpack.c.b16 %v962, %v961
        %v1022 = vpack.c.b16 %v964, %v963
        %v1023 = vpack.c.b16 %v966, %v965
        %v1024 = vpack.c.b16 %v968, %v967
        %v1025 = vpack.c.b16 %v970, %v969
        %v1026 = vpack.c.b16 %v972, %v971
        %v1027 = vpack.c.b16 %v974, %v973
        %v1028 = vpack.c.b16 %v976, %v975
        %v1029 = vpack.c.b16 %v978, %v977
        %v1030 = vpack.c.b16 %v980, %v979
        %v1031 = vpack.c.b16 %v982, %v981
        %v1032 = vpack.c.b16 %v984, %v983
        %v1033 = vpack.c.b16 %v986, %v985
        %v1034 = vpack.c.b16 %v988, %v987
        %v1035 = vpack.c.b16 %v990, %v989
        %v1036 = vpack.c.b16 %v992, %v991
        %v1037 = vpack.c.b16 %v994, %v993
        %v1038 = vpack.c.b16 %v996, %v995
        %v1039 = vpack.c.b16 %v998, %v997
        %v1040 = vpack.c.b16 %v1000, %v999
        %v1041 = vpack.c.b16 %v1002, %v1001
        %v1042 = vpack.c.b16 %v1004, %v1003
        %v1043 = vpack.c.b16 %v1006, %v1005
        %v1044 = vpack.c.b16 %v1008, %v1007
        %v1045 = vpack.c.b16 %v1010, %v1009
        %v1046 = vpack.c.b16 %v1012, %v1011
        %v1047 = vpack.c.b16 %v1014, %v1013
        %v1048 = vpack.c.b16 %v1016, %v1015
        %1081 = vmatprep.subr.bf16.mxu0 0
        %1082 = vmatpush1.bf16.msra.mxu0 %v1017
        %1083 = vmatprep.subr.bf16.mxu0 0
        %1084 = vmatpush1.bf16.msra.mxu0 %v1018
        %1085 = vmatprep.subr.bf16.mxu0 0
        %1086 = vmatpush1.bf16.msra.mxu0 %v1019
        %1087 = vmatprep.subr.bf16.mxu0 0
        %1088 = vmatpush1.bf16.msra.mxu0 %v1020
        %1089 = vmatprep.subr.bf16.mxu0 0
        %1090 = vmatpush1.bf16.msra.mxu0 %v1021
        %1091 = vmatprep.subr.bf16.mxu0 0
        %1092 = vmatpush1.bf16.msra.mxu0 %v1022
        %1093 = vmatprep.subr.bf16.mxu0 0
        %1094 = vmatpush1.bf16.msra.mxu0 %v1023
        %1095 = vmatprep.subr.bf16.mxu0 0
        %1096 = vmatpush1.bf16.msra.mxu0 %v1024
        %1097 = vmatprep.subr.bf16.mxu0 0
        %1098 = vmatpush1.bf16.msra.mxu0 %v1025
        %1099 = vmatprep.subr.bf16.mxu0 0
        %1100 = vmatpush1.bf16.msra.mxu0 %v1026
        %1101 = vmatprep.subr.bf16.mxu0 0
        %1102 = vmatpush1.bf16.msra.mxu0 %v1027
        %1103 = vmatprep.subr.bf16.mxu0 0
        %1104 = vmatpush1.bf16.msra.mxu0 %v1028
        %1105 = vmatprep.subr.bf16.mxu0 0
        %1106 = vmatpush1.bf16.msra.mxu0 %v1029
        %1107 = vmatprep.subr.bf16.mxu0 0
        %1108 = vmatpush1.bf16.msra.mxu0 %v1030
        %1109 = vmatprep.subr.bf16.mxu0 0
        %1110 = vmatpush1.bf16.msra.mxu0 %v1031
        %1111 = vmatprep.subr.bf16.mxu0 0
        %1112 = vmatpush1.bf16.msra.mxu0 %v1032
        %1113 = vmatprep.mubr.bf16.mxu0 %v822
        %1114 = vmatmul.mubr.bf16.gmra.mrb[0].mxu0 %v821
        %v1115 = vpop.f32.mrb[0].mxu0
        %v1116 = vadd.f32 0.0, %v1115
        %v1117 = vpop.f32.mrb[0].mxu0
        %v1118 = vpop.f32.mrb[0].mxu0
        %v1119 = vadd.f32 0.0, %v1118
        %v1120 = vpop.f32.mrb[0].mxu0
        %1121 = vdwg.mxu0
        %1122 = vmatprep.subr.bf16.mxu0 0
        %1123 = vmatpush1.bf16.msra.mxu0 %v1033
        %1124 = vmatprep.subr.bf16.mxu0 0
        %1125 = vmatpush1.bf16.msra.mxu0 %v1034
        %1126 = vmatprep.subr.bf16.mxu0 0
        %1127 = vmatpush1.bf16.msra.mxu0 %v1035
        %1128 = vmatprep.subr.bf16.mxu0 0
        %1129 = vmatpush1.bf16.msra.mxu0 %v1036
        %1130 = vmatprep.subr.bf16.mxu0 0
        %1131 = vmatpush1.bf16.msra.mxu0 %v1037
        %1132 = vmatprep.subr.bf16.mxu0 0
        %1133 = vmatpush1.bf16.msra.mxu0 %v1038
        %1134 = vmatprep.subr.bf16.mxu0 0
        %1135 = vmatpush1.bf16.msra.mxu0 %v1039
        %1136 = vmatprep.subr.bf16.mxu0 0
        %1137 = vmatpush1.bf16.msra.mxu0 %v1040
        %1138 = vmatprep.subr.bf16.mxu0 0
        %1139 = vmatpush1.bf16.msra.mxu0 %v1041
        %1140 = vmatprep.subr.bf16.mxu0 0
        %1141 = vmatpush1.bf16.msra.mxu0 %v1042
        %1142 = vmatprep.subr.bf16.mxu0 0
        %1143 = vmatpush1.bf16.msra.mxu0 %v1043
        %1144 = vmatprep.subr.bf16.mxu0 0
        %1145 = vmatpush1.bf16.msra.mxu0 %v1044
        %1146 = vmatprep.subr.bf16.mxu0 0
        %1147 = vmatpush1.bf16.msra.mxu0 %v1045
        %1148 = vmatprep.subr.bf16.mxu0 0
        %1149 = vmatpush1.bf16.msra.mxu0 %v1046
        %1150 = vmatprep.subr.bf16.mxu0 0
        %1151 = vmatpush1.bf16.msra.mxu0 %v1047
        %1152 = vmatprep.subr.bf16.mxu0 0
        %1153 = vmatpush1.bf16.msra.mxu0 %v1048
        %1154 = vmatprep.mubr.bf16.mxu0 %v824
        %1155 = vmatmul.mubr.bf16.gmra.mrb[0].mxu0 %v823
        %v1156 = vpop.f32.mrb[0].mxu0
        %v1157 = vadd.f32 %v1116, %v1156
        %v1158 = vpop.f32.mrb[0].mxu0
        %v1159 = vpop.f32.mrb[0].mxu0
        %v1160 = vadd.f32 %v1119, %v1159
        %v1161 = vpop.f32.mrb[0].mxu0
        %1162 = vdwg.mxu0
        %v1227 = vunpack.c.l.b16 %v749
        %v1228 = vunpack.c.l.b16 %v750
        %v1229 = vunpack.c.l.b16 %v751
        %v1230 = vunpack.c.l.b16 %v752
        %v1231 = vunpack.c.l.b16 %v753
        %v1232 = vunpack.c.l.b16 %v754
        %v1233 = vunpack.c.l.b16 %v755
        %v1234 = vunpack.c.l.b16 %v756
        %v1235 = vunpack.c.l.b16 %v757
        %v1236 = vunpack.c.l.b16 %v758
        %v1237 = vunpack.c.l.b16 %v759
        %v1238 = vunpack.c.l.b16 %v760
        %v1239 = vunpack.c.l.b16 %v761
        %v1240 = vunpack.c.l.b16 %v762
        %v1241 = vunpack.c.l.b16 %v763
        %v1242 = vunpack.c.l.b16 %v764
        %v1243 = vunpack.c.l.b16 %v765
        %v1244 = vunpack.c.l.b16 %v766
        %v1245 = vunpack.c.l.b16 %v767
        %v1246 = vunpack.c.l.b16 %v768
        %v1247 = vunpack.c.l.b16 %v769
        %v1248 = vunpack.c.l.b16 %v770
        %v1249 = vunpack.c.l.b16 %v771
        %v1250 = vunpack.c.l.b16 %v772
        %v1251 = vunpack.c.l.b16 %v773
        %v1252 = vunpack.c.l.b16 %v774
        %v1253 = vunpack.c.l.b16 %v775
        %v1254 = vunpack.c.l.b16 %v776
        %v1255 = vunpack.c.l.b16 %v777
        %v1256 = vunpack.c.l.b16 %v778
        %v1257 = vunpack.c.l.b16 %v779
        %v1258 = vunpack.c.l.b16 %v780
        %v1259 = vunpack.c.l.b16 %v781
        %v1260 = vunpack.c.l.b16 %v782
        %v1261 = vunpack.c.l.b16 %v783
        %v1262 = vunpack.c.l.b16 %v784
        %v1263 = vunpack.c.l.b16 %v785
        %v1264 = vunpack.c.l.b16 %v786
        %v1265 = vunpack.c.l.b16 %v787
        %v1266 = vunpack.c.l.b16 %v788
        %v1267 = vunpack.c.l.b16 %v789
        %v1268 = vunpack.c.l.b16 %v790
        %v1269 = vunpack.c.l.b16 %v791
        %v1270 = vunpack.c.l.b16 %v792
        %v1271 = vunpack.c.l.b16 %v793
        %v1272 = vunpack.c.l.b16 %v794
        %v1273 = vunpack.c.l.b16 %v795
        %v1274 = vunpack.c.l.b16 %v796
        %v1275 = vunpack.c.l.b16 %v797
        %v1276 = vunpack.c.l.b16 %v798
        %v1277 = vunpack.c.l.b16 %v799
        %v1278 = vunpack.c.l.b16 %v800
        %v1279 = vunpack.c.l.b16 %v801
        %v1280 = vunpack.c.l.b16 %v802
        %v1281 = vunpack.c.l.b16 %v803
        %v1282 = vunpack.c.l.b16 %v804
        %v1283 = vunpack.c.l.b16 %v805
        %v1284 = vunpack.c.l.b16 %v806
        %v1285 = vunpack.c.l.b16 %v807
        %v1286 = vunpack.c.l.b16 %v808
        %v1287 = vunpack.c.l.b16 %v809
        %v1288 = vunpack.c.l.b16 %v810
        %v1289 = vunpack.c.l.b16 %v811
        %v1290 = vunpack.c.l.b16 %v812
        %v1291 = vpack.c.b16 %v1228, %v1227
        %v1292 = vpack.c.b16 %v1230, %v1229
        %v1293 = vpack.c.b16 %v1232, %v1231
        %v1294 = vpack.c.b16 %v1234, %v1233
        %v1295 = vpack.c.b16 %v1236, %v1235
        %v1296 = vpack.c.b16 %v1238, %v1237
        %v1297 = vpack.c.b16 %v1240, %v1239
        %v1298 = vpack.c.b16 %v1242, %v1241
        %v1299 = vpack.c.b16 %v1244, %v1243
        %v1300 = vpack.c.b16 %v1246, %v1245
        %v1301 = vpack.c.b16 %v1248, %v1247
        %v1302 = vpack.c.b16 %v1250, %v1249
        %v1303 = vpack.c.b16 %v1252, %v1251
        %v1304 = vpack.c.b16 %v1254, %v1253
        %v1305 = vpack.c.b16 %v1256, %v1255
        %v1306 = vpack.c.b16 %v1258, %v1257
        %v1307 = vpack.c.b16 %v1260, %v1259
        %v1308 = vpack.c.b16 %v1262, %v1261
        %v1309 = vpack.c.b16 %v1264, %v1263
        %v1310 = vpack.c.b16 %v1266, %v1265
        %v1311 = vpack.c.b16 %v1268, %v1267
        %v1312 = vpack.c.b16 %v1270, %v1269
        %v1313 = vpack.c.b16 %v1272, %v1271
        %v1314 = vpack.c.b16 %v1274, %v1273
        %v1315 = vpack.c.b16 %v1276, %v1275
        %v1316 = vpack.c.b16 %v1278, %v1277
        %v1317 = vpack.c.b16 %v1280, %v1279
        %v1318 = vpack.c.b16 %v1282, %v1281
        %v1319 = vpack.c.b16 %v1284, %v1283
        %v1320 = vpack.c.b16 %v1286, %v1285
        %v1321 = vpack.c.b16 %v1288, %v1287
        %v1322 = vpack.c.b16 %v1290, %v1289
        %1355 = vmatprep.subr.bf16.mxu0 0
        %1356 = vmatpush1.bf16.msra.mxu0 %v1291
        %1357 = vmatprep.subr.bf16.mxu0 0
        %1358 = vmatpush1.bf16.msra.mxu0 %v1292
        %1359 = vmatprep.subr.bf16.mxu0 0
        %1360 = vmatpush1.bf16.msra.mxu0 %v1293
        %1361 = vmatprep.subr.bf16.mxu0 0
        %1362 = vmatpush1.bf16.msra.mxu0 %v1294
        %1363 = vmatprep.subr.bf16.mxu0 0
        %1364 = vmatpush1.bf16.msra.mxu0 %v1295
        %1365 = vmatprep.subr.bf16.mxu0 0
        %1366 = vmatpush1.bf16.msra.mxu0 %v1296
        %1367 = vmatprep.subr.bf16.mxu0 0
        %1368 = vmatpush1.bf16.msra.mxu0 %v1297
        %1369 = vmatprep.subr.bf16.mxu0 0
        %1370 = vmatpush1.bf16.msra.mxu0 %v1298
        %1371 = vmatprep.subr.bf16.mxu0 0
        %1372 = vmatpush1.bf16.msra.mxu0 %v1299
        %1373 = vmatprep.subr.bf16.mxu0 0
        %1374 = vmatpush1.bf16.msra.mxu0 %v1300
        %1375 = vmatprep.subr.bf16.mxu0 0
        %1376 = vmatpush1.bf16.msra.mxu0 %v1301
        %1377 = vmatprep.subr.bf16.mxu0 0
        %1378 = vmatpush1.bf16.msra.mxu0 %v1302
        %1379 = vmatprep.subr.bf16.mxu0 0
        %1380 = vmatpush1.bf16.msra.mxu0 %v1303
        %1381 = vmatprep.subr.bf16.mxu0 0
        %1382 = vmatpush1.bf16.msra.mxu0 %v1304
        %1383 = vmatprep.subr.bf16.mxu0 0
        %1384 = vmatpush1.bf16.msra.mxu0 %v1305
        %1385 = vmatprep.subr.bf16.mxu0 0
        %1386 = vmatpush1.bf16.msra.mxu0 %v1306
        %1387 = vmatprep.mubr.bf16.mxu0 %v746
        %1388 = vmatmul.mubr.bf16.gmra.mrb[0].mxu0 %v745
        %v1389 = vpop.f32.mrb[0].mxu0
        %v1390 = vadd.f32 %v1157, %v1389
        %v1391 = vpop.f32.mrb[0].mxu0
        %v1392 = vpop.f32.mrb[0].mxu0
        %v1393 = vadd.f32 %v1160, %v1392
        %v1394 = vpop.f32.mrb[0].mxu0
        %1395 = vdwg.mxu0
        %1396 = vmatprep.subr.bf16.mxu0 0
        %1397 = vmatpush1.bf16.msra.mxu0 %v1307
        %1398 = vmatprep.subr.bf16.mxu0 0
        %1399 = vmatpush1.bf16.msra.mxu0 %v1308
        %1400 = vmatprep.subr.bf16.mxu0 0
        %1401 = vmatpush1.bf16.msra.mxu0 %v1309
        %1402 = vmatprep.subr.bf16.mxu0 0
        %1403 = vmatpush1.bf16.msra.mxu0 %v1310
        %1404 = vmatprep.subr.bf16.mxu0 0
        %1405 = vmatpush1.bf16.msra.mxu0 %v1311
        %1406 = vmatprep.subr.bf16.mxu0 0
        %1407 = vmatpush1.bf16.msra.mxu0 %v1312
        %1408 = vmatprep.subr.bf16.mxu0 0
        %1409 = vmatpush1.bf16.msra.mxu0 %v1313
        %1410 = vmatprep.subr.bf16.mxu0 0
        %1411 = vmatpush1.bf16.msra.mxu0 %v1314
        %1412 = vmatprep.subr.bf16.mxu0 0
        %1413 = vmatpush1.bf16.msra.mxu0 %v1315
        %1414 = vmatprep.subr.bf16.mxu0 0
        %1415 = vmatpush1.bf16.msra.mxu0 %v1316
        %1416 = vmatprep.subr.bf16.mxu0 0
        %1417 = vmatpush1.bf16.msra.mxu0 %v1317
        %1418 = vmatprep.subr.bf16.mxu0 0
        %1419 = vmatpush1.bf16.msra.mxu0 %v1318
        %1420 = vmatprep.subr.bf16.mxu0 0
        %1421 = vmatpush1.bf16.msra.mxu0 %v1319
        %1422 = vmatprep.subr.bf16.mxu0 0
        %1423 = vmatpush1.bf16.msra.mxu0 %v1320
        %1424 = vmatprep.subr.bf16.mxu0 0
        %1425 = vmatpush1.bf16.msra.mxu0 %v1321
        %1426 = vmatprep.subr.bf16.mxu0 0
        %1427 = vmatpush1.bf16.msra.mxu0 %v1322
        %1428 = vmatprep.mubr.bf16.mxu0 %v748
        %1429 = vmatmul.mubr.bf16.gmra.mrb[0].mxu0 %v747
        %v1430 = vpop.f32.mrb[0].mxu0
        %v1431 = vadd.f32 %v1390, %v1430
        %v1432 = vpop.f32.mrb[0].mxu0
        %v1433 = vpop.f32.mrb[0].mxu0
        %v1434 = vadd.f32 %v1393, %v1433
        %v1435 = vpop.f32.mrb[0].mxu0
        %1436 = vdwg.mxu0
        %v1437 = vpack.c.bf16 %v734, %v731
        %v1438 = vld [vmem:[#allocation10] sm:$0xf]
        %v1439 = vld [vmem:[#allocation10 + $0x4] sm:$0xf]
        %v1440 = vld [vmem:[#allocation10 + $0x8] sm:$0xf]
        %v1441 = vld [vmem:[#allocation10 + $0xc] sm:$0xf]
        %v1442 = vld [vmem:[#allocation10 + $0x10] sm:$0xf]
        %v1443 = vld [vmem:[#allocation10 + $0x14] sm:$0xf]
        %v1444 = vld [vmem:[#allocation10 + $0x18] sm:$0xf]
        %v1445 = vld [vmem:[#allocation10 + $0x1c] sm:$0xf]
        %v1454 = vunpack.c.l.b16 %v1438
        %v1455 = vunpack.c.l.b16 %v1439
        %v1456 = vunpack.c.l.b16 %v1440
        %v1457 = vunpack.c.l.b16 %v1441
        %v1458 = vunpack.c.l.b16 %v1442
        %v1459 = vunpack.c.l.b16 %v1443
        %v1460 = vunpack.c.l.b16 %v1444
        %v1461 = vunpack.c.l.b16 %v1445
        %v1462 = vpack.c.b16 %v1455, %v1454
        %v1463 = vpack.c.b16 %v1457, %v1456
        %v1464 = vpack.c.b16 %v1459, %v1458
        %v1465 = vpack.c.b16 %v1461, %v1460
        %v1471 = vsel %vm692, %v1437, 0
        %1473 = vmatprep.subr.bf16.mxu0 0
        %1474 = vmatpush1.bf16.msra.mxu0 %v1462
        %1475 = vmatprep.subr.bf16.mxu0 0
        %1476 = vmatpush1.bf16.msra.mxu0 %v1463
        %1477 = vmatprep.subr.bf16.mxu0 0
        %1478 = vmatpush1.bf16.msra.mxu0 %v1464
        %1479 = vmatprep.subr.bf16.mxu0 0
        %1480 = vmatpush1.bf16.msra.mxu0 %v1465
        %1481 = vmatprep.subr.bf16.mxu0 0
        %1482 = vmatpush1.bf16.msra.mxu0 0
        %1483 = vmatprep.subr.bf16.mxu0 0
        %1484 = vmatpush1.bf16.msra.mxu0 0
        %1485 = vmatprep.subr.bf16.mxu0 0
        %1486 = vmatpush1.bf16.msra.mxu0 0
        %1487 = vmatprep.subr.bf16.mxu0 0
        %1488 = vmatpush1.bf16.msra.mxu0 0
        %1489 = vmatprep.subr.bf16.mxu0 0
        %1490 = vmatpush1.bf16.msra.mxu0 0
        %1491 = vmatprep.subr.bf16.mxu0 0
        %1492 = vmatpush1.bf16.msra.mxu0 0
        %1493 = vmatprep.subr.bf16.mxu0 0
        %1494 = vmatpush1.bf16.msra.mxu0 0
        %1495 = vmatprep.subr.bf16.mxu0 0
        %1496 = vmatpush1.bf16.msra.mxu0 0
        %1497 = vmatprep.subr.bf16.mxu0 0
        %1498 = vmatpush1.bf16.msra.mxu0 0
        %1499 = vmatprep.subr.bf16.mxu0 0
        %1500 = vmatpush1.bf16.msra.mxu0 0
        %1501 = vmatprep.subr.bf16.mxu0 0
        %1502 = vmatpush1.bf16.msra.mxu0 0
        %1503 = vmatprep.subr.bf16.mxu0 0
        %1504 = vmatpush1.bf16.msra.mxu0 0
        %1505 = vmatprep.mubr.bf16.mxu0 0
        %1506 = vmatmul.mubr.bf16.gmra.mrb[0].mxu0 %v1471
        %v1507 = vpop.f32.mrb[0].mxu0
        %v1508 = vadd.f32 0.0, %v1507
        %v1509 = vpop.f32.mrb[0].mxu0
        %v1510 = vpop.f32.mrb[0].mxu0
        %v1511 = vadd.f32 0.0, %v1510
        %v1512 = vpop.f32.mrb[0].mxu0
        %1513 = vdwg.mxu0
        %v1514 = vadd.f32 %v1431, %v1508
        %v1515 = vadd.f32 %v1434, %v1511
        %v1516 = vld [vmem:[%s10] sm:$0x1]
        %v1518 = vlaneseq
        %v1519 = vshrl.u32 %v1518, 7
        %v1520 = vsub.s32 0, %v1519
        %v1521 = vrot.slane %v1516, %v1520
        %v1523 = vadd.f32 %v1514, %v1521
        %v1524 = vadd.f32 %v1515, %v1521
        %v1525 = vmax.f32 %v1523, 0.0
        %v1526 = vmax.f32 %v1524, 0.0
        %v1527 = vpack.c.bf16 %v1526, %v1525
        %v1528 = vld [vmem:[%s11] sm:$0xf]
        %v1529 = vld [vmem:[%s11 + $0x4] sm:$0xf]
        %v1530 = vld [vmem:[%s11 + $0x8] sm:$0xf]
        %v1531 = vld [vmem:[%s11 + $0xc] sm:$0xf]
        %v1532 = vld [vmem:[%s11 + $0x10] sm:$0xf]
        %v1533 = vld [vmem:[%s11 + $0x14] sm:$0xf]
        %v1534 = vld [vmem:[%s11 + $0x18] sm:$0xf]
        %v1535 = vld [vmem:[%s11 + $0x1c] sm:$0xf]
        %v1536 = vld [vmem:[%s11 + $0x20] sm:$0xf]
        %v1537 = vld [vmem:[%s11 + $0x24] sm:$0xf]
        %v1538 = vld [vmem:[%s11 + $0x28] sm:$0xf]
        %v1539 = vld [vmem:[%s11 + $0x2c] sm:$0xf]
        %v1540 = vld [vmem:[%s11 + $0x30] sm:$0xf]
        %v1541 = vld [vmem:[%s11 + $0x34] sm:$0xf]
        %v1542 = vld [vmem:[%s11 + $0x38] sm:$0xf]
        %v1543 = vld [vmem:[%s11 + $0x3c] sm:$0xf]
        %v1544 = vld [vmem:[%s12] sm:$0x1]
        %v1546 = vlaneseq
        %v1547 = vshrl.u32 %v1546, 7
        %v1548 = vsub.s32 0, %v1547
        %v1549 = vrot.slane %v1544, %v1548
        %v1567 = vunpack.c.l.b16 %v1528
        %v1568 = vunpack.c.l.b16 %v1529
        %v1569 = vunpack.c.l.b16 %v1530
        %v1570 = vunpack.c.l.b16 %v1531
        %v1571 = vunpack.c.l.b16 %v1532
        %v1572 = vunpack.c.l.b16 %v1533
        %v1573 = vunpack.c.l.b16 %v1534
        %v1574 = vunpack.c.l.b16 %v1535
        %v1575 = vunpack.c.l.b16 %v1536
        %v1576 = vunpack.c.l.b16 %v1537
        %v1577 = vunpack.c.l.b16 %v1538
        %v1578 = vunpack.c.l.b16 %v1539
        %v1579 = vunpack.c.l.b16 %v1540
        %v1580 = vunpack.c.l.b16 %v1541
        %v1581 = vunpack.c.l.b16 %v1542
        %v1582 = vunpack.c.l.b16 %v1543
        %v1583 = vpack.c.b16 %v1568, %v1567
        %v1584 = vpack.c.b16 %v1570, %v1569
        %v1585 = vpack.c.b16 %v1572, %v1571
        %v1586 = vpack.c.b16 %v1574, %v1573
        %v1587 = vpack.c.b16 %v1576, %v1575
        %v1588 = vpack.c.b16 %v1578, %v1577
        %v1589 = vpack.c.b16 %v1580, %v1579
        %v1590 = vpack.c.b16 %v1582, %v1581
        %1599 = vmatprep.subr.bf16.mxu0 0
        %1600 = vmatpush1.bf16.msra.mxu0 %v1583
        %1601 = vmatprep.subr.bf16.mxu0 0
        %1602 = vmatpush1.bf16.msra.mxu0 %v1584
        %1603 = vmatprep.subr.bf16.mxu0 0
        %1604 = vmatpush1.bf16.msra.mxu0 %v1585
        %1605 = vmatprep.subr.bf16.mxu0 0
        %1606 = vmatpush1.bf16.msra.mxu0 %v1586
        %1607 = vmatprep.subr.bf16.mxu0 0
        %1608 = vmatpush1.bf16.msra.mxu0 %v1587
        %1609 = vmatprep.subr.bf16.mxu0 0
        %1610 = vmatpush1.bf16.msra.mxu0 %v1588
        %1611 = vmatprep.subr.bf16.mxu0 0
        %1612 = vmatpush1.bf16.msra.mxu0 %v1589
        %1613 = vmatprep.subr.bf16.mxu0 0
        %1614 = vmatpush1.bf16.msra.mxu0 %v1590
        %1615 = vmatprep.subr.bf16.mxu0 0
        %1616 = vmatpush1.bf16.msra.mxu0 0
        %1617 = vmatprep.subr.bf16.mxu0 0
        %1618 = vmatpush1.bf16.msra.mxu0 0
        %1619 = vmatprep.subr.bf16.mxu0 0
        %1620 = vmatpush1.bf16.msra.mxu0 0
        %1621 = vmatprep.subr.bf16.mxu0 0
        %1622 = vmatpush1.bf16.msra.mxu0 0
        %1623 = vmatprep.subr.bf16.mxu0 0
        %1624 = vmatpush1.bf16.msra.mxu0 0
        %1625 = vmatprep.subr.bf16.mxu0 0
        %1626 = vmatpush1.bf16.msra.mxu0 0
        %1627 = vmatprep.subr.bf16.mxu0 0
        %1628 = vmatpush1.bf16.msra.mxu0 0
        %1629 = vmatprep.subr.bf16.mxu0 0
        %1630 = vmatpush1.bf16.msra.mxu0 0
        %1631 = vmatprep.mubr.bf16.mxu0 0
        %1632 = vmatmul.mubr.bf16.gmra.mrb[0].mxu0 %v1527
        %v1633 = vpop.f32.mrb[0].mxu0
        %v1634 = vadd.f32 %v1549, %v1633
        %v1635 = vpop.f32.mrb[0].mxu0
        %v1636 = vpop.f32.mrb[0].mxu0
        %v1637 = vadd.f32 %v1549, %v1636
        %v1638 = vpop.f32.mrb[0].mxu0
        %1639 = vdwg.mxu0
        %v1640 = vmul.f32 %v1634, %v1634
        %v1641 = vmul.f32 %v1637, %v1637
        %vm1642 = vcmask 15360
        %v1643 = vsel %vm1642, %v1640, 0.0
        %1644 = vadd.xlane.f32.xlu0 %v1643
        %v1645 = vpop.xlane.xlu0 %1644
        %v1646 = vsel %vm1642, %v1641, 0.0
        %1647 = vadd.xlane.f32.xlu0 %v1646
        %v1648 = vpop.xlane.xlu0 %1647
        %v1649 = vadd.f32 %v1645, 1e-12
        %v1650 = vadd.f32 %v1648, 1e-12
        %v1651 = vrsqrt.pop %v1649
        %v1652 = vrsqrt.pop %v1650
        %v1653 = vmul.f32 %v1634, %v1651
        %v1654 = vmul.f32 %v1637, %v1652
        %1655 = vst.msk [vmem:[%s584] sm:$0xff] %vm1642, %v1653
        %1656 = vst.msk [vmem:[%s584 + $0x8] sm:$0xff] %vm1642, %v1654
        %s1657 = smul.u32 2, %s32
        %p1658 = scmp.lt.s32.totalorder %s1657, 3
        %s1659 = scalar_select %p1658, %s1657, 3
        %s1660 = smul.addr %s1659, 8
        %s1661 = scalar_lea.vmem %s13, %s1660
        // Predicated region
        $region97: #{tpu_custom_call.1} parent=71 // pred_check
          %p1662 = pneg %p338
        $region98: #{tpu_custom_call.1} parent=71 // pred_check_branch
          %1664 = sbr.rel (%p1662) target = $region100
        $region99: #{tpu_custom_call.1} parent=71 // pred_region
          %s1665 = smul.u32 2, %s32
        $region100: #{tpu_custom_call.1} parent=71 // pred_fallthru
          _
      $region72: #{tpu_custom_call.1} parent=5 // pred_fallthru
        _
      %p1666 = scmp.le.s32.totalorder 2, %s27
      // Predicated region
      $region101: #{tpu_custom_call.1} parent=5 // pred_check
        %p1667 = pneg %p1666
      $region102: #{tpu_custom_call.1} parent=5 // pred_check_branch
        %1669 = sbr.rel (%p1667) target = $region104
      $region103: #{tpu_custom_call.1} parent=5 // pred_region
        %s1670 = ssub.s32 %s27, 2
        // Predicated region
        $region105: #{tpu_custom_call.1} parent=103 // pred_check
          %p1671 = pneg %p344
        $region106: #{tpu_custom_call.1} parent=103 // pred_check_branch
          %1673 = sbr.rel (%p1671) target = $region108
        $region107: #{tpu_custom_call.1} parent=103 // pred_region
          %s1674 = smul.u32 2, %s33
          %p1675 = scmp.lt.s32.totalorder %s1674, 3
          %s1676 = scalar_select %p1675, %s1674, 3
          %s1677 = smul.addr %s1676, 8
          %s1678 = scalar_lea.vmem %s13, %s1677
        $region108: #{tpu_custom_call.1} parent=103 // pred_fallthru
          _
      $region104: #{tpu_custom_call.1} parent=5 // pred_fallthru
        _
    $region6: #{tpu_custom_call.1} parent=1 // loop_footer
      %s31 = sadd.s32 1, %s27
    $region7: #{tpu_custom_call.1} parent=1 // loop_footer_branch
      %26 = sbr.rel target = $region3
    $region8: #{tpu_custom_call.1} parent=1 // loop_exit
      _
    %1679 = vsyncpa [#allocation3], 1
    %s1680 = scalar_lea.sflag [#allocation3], 1
    %1681 = vsyncpa %s1680, 1
    %1682 = vsyncpa [#allocation5], 1
    %s1683 = scalar_lea.sflag [#allocation5], 1
    %1684 = vsyncpa %s1683, 1
    %1685 = vsyncpa [#allocation8], 1
    %1686 = vsyncpa [#allocation11], 1

</llo_original>
